<compile_context>
chip_gen: v7x
topology: tpu7x:2x2x1
jax: 0.10.0
libtpu: 0.0.40
codegen_flags: <defaults>
</compile_context>

<pallas_src>
import functools

import numpy as np
import jax
import jax.numpy as jnp
from jax import lax
from jax.experimental import pallas as pl
from jax.experimental.pallas import tpu as pltpu


# ----------------------------- Pallas kernel --------------------------------

def fused_fourier_kernel(x_ref, masks_ref, w1_ref, w2_ref, scale_ref,
                         fwd_ref, inv_ref,
                         spat_ref, fb_ref, out_ref, *,
                         H, W, BT, C_in, C_out):
    """One batch tile (BT images); everything lane-dense (last dim = H*W).

    x_ref:     (BT*C_in, HW)      input planes, row-flattened, image-major
    masks_ref: (9, HW)            validity mask per 3x3 tap (zero padding)
    w1_ref:    (C_out, 9*C_in+1)  conv1 im2col weights, bias folded as last col
    w2_ref:    (C_out, 9*C_out+1) conv2 im2col weights, bias folded as last col
    scale_ref: (BT*C_out, 2*HW)   [1+alpha*filter | 1+alpha*filter], tiled
    fwd_ref:   (HW, 2*HW) bf16    [Re(F) | Im(F)],  F = shifted forward 2D DFT
    inv_ref:   (2*HW, HW) bf16    [Re(G); -Im(G)],  G = shifted inverse 2D DFT
    spat_ref:  (BT*C_out, HW)     conv output (spatial features)
    fb_ref:    (BT*C_out, 2*HW)   [Re(fftshift(fft2)) | Im(...)]
    out_ref:   (BT*C_out, HW)     filtered_spatial
    """
    HW = H * W
    dot32 = functools.partial(jnp.dot, preferred_element_type=jnp.float32)

    masks = masks_ref[...]                                     # (9, HW)
    mask_rows = [masks[k:k + 1, :] for k in range(9)]          # hoisted slices
    ones_row = jnp.ones((1, HW), jnp.float32)                  # bias tap
    w1 = w1_ref[...]
    w2 = w2_ref[...]

    def conv3x3_relu(h, w_aug):
        # im2col on the flat layout: tap k = (dy+1)*3 + (dx+1).  Shifting the
        # flattened plane by dy*W + dx lanes gives the (dy, dx) neighbour for
        # all pixels at once; wrapped pixels are zeroed with the precomputed
        # mask.  Static-shift jnp.roll lowers to the XLU rotate, so the im2col
        # build stays off the VALU/ld-st slots.  Bias rides as a ones row.
        taps = []
        k = 0
        for dy in (-1, 0, 1):
            for dx in (-1, 0, 1):
                off = dy * W + dx
                shifted = h if off == 0 else jnp.roll(h, -off, axis=1)
                taps.append(shifted * mask_rows[k])
                k += 1
        taps.append(ones_row)
        patches = jnp.concatenate(taps, axis=0)                # (9*C+1, HW)
        return jnp.maximum(dot32(w_aug, patches), 0.0)         # (C_out, HW)

    # Convs per local image (tiny matmuls), stacked directly into the
    # (BT*C_out, HW) layout the DFT matmuls want -> no lane-crossing relayout.
    blocks = []
    for b in range(BT):
        xb = x_ref[b * C_in:(b + 1) * C_in, :]                 # (C_in, HW)
        blocks.append(conv3x3_relu(conv3x3_relu(xb, w1), w2))
    s = jnp.concatenate(blocks, axis=0)                        # (BT*C_out, HW)
    spat_ref[...] = s

    # fftshift(fft2(s)):  [Re | Im] = s @ [ReF | ImF]   (bf16 MXU, f32 acc)
    fb = dot32(s.astype(jnp.bfloat16), fwd_ref[...])           # (BT*C_out, 2HW)
    fb_ref[...] = fb

    # res = fft * (1 + alpha*filter);  real(ifft2(ifftshift(res))):
    #   out = res_r @ Re(G) - res_i @ Im(G)  ==  (fb * scale) @ [ReG; -ImG]
    res = (fb * scale_ref[...]).astype(jnp.bfloat16)
    out_ref[...] = dot32(res, inv_ref[...])                    # (BT*C_out, HW)


# ------------------------------- glue (JAX) ---------------------------------

def _build_dft_operators(H, W):
    """Kronecker-form shifted DFT operators on row-flattened planes (bf16).

    With Y = Mh @ X @ Mw  ==  fftshift(fft2(X)) and
         Z = Gh @ Y @ Gw  ==  ifft2(ifftshift(Y)):
      vec(Y) = vec(X) @ kron(Mh.T, Mw)     (row-major vec, planes as rows)
      vec(Z) = vec(Y) @ kron(Gh.T, Gw)
    Packed real operators returned (bfloat16, f32 accumulation on the MXU):
      fwd_cat    = [Re(F) | Im(F)]   (HW, 2*HW)
      inv_signed = [Re(G); -Im(G)]   (2*HW, HW)
    """
    # ifftshift is baked using fftshift: only identical for even H and W.
    assert H % 2 == 0 and W % 2 == 0, "shift-baked DFT requires even H, W"
    eye_h = jnp.eye(H, dtype=jnp.complex64)
    eye_w = jnp.eye(W, dtype=jnp.complex64)
    mh = jnp.fft.fftshift(jnp.fft.fft(eye_h, axis=0), axes=0)      # row DFT
    mw = jnp.fft.fftshift(jnp.fft.fft(eye_w, axis=0).T, axes=1)    # col DFT
    gh = jnp.fft.fftshift(jnp.fft.ifft(eye_h, axis=0), axes=1)
    gw = jnp.fft.fftshift(jnp.fft.ifft(eye_w, axis=0), axes=0)
    fwd = jnp.kron(mh.T, mw)                                       # (HW, HW)
    inv = jnp.kron(gh.T, gw)                                       # (HW, HW)
    fwd_cat = jnp.concatenate([jnp.real(fwd), jnp.imag(fwd)], axis=1)
    inv_signed = jnp.concatenate([jnp.real(inv), -jnp.imag(inv)], axis=0)
    return fwd_cat.astype(jnp.bfloat16), inv_signed.astype(jnp.bfloat16)


def _make_tap_masks(H, W):
    """(9, H*W) f32 validity masks for each 3x3 tap (zero 'same' padding)."""
    ii, jj = jnp.meshgrid(jnp.arange(H), jnp.arange(W), indexing='ij')
    rows = []
    for dy in (-1, 0, 1):
        for dx in (-1, 0, 1):
            valid = ((ii + dy >= 0) & (ii + dy < H) &
                     (jj + dx >= 0) & (jj + dx < W))
            rows.append(valid.reshape(-1))
    return jnp.stack(rows, axis=0).astype(jnp.float32)


def make_highpass_filter(C_out, H, W, cutoff_ratio=0.3):
    yy, xx = jnp.meshgrid(jnp.arange(H, dtype=jnp.float32),
                          jnp.arange(W, dtype=jnp.float32), indexing='ij')
    cx, cy = W // 2, H // 2
    radius = cutoff_ratio * min(H, W)
    dist2 = (xx - cx) ** 2 + (yy - cy) ** 2
    lowpass = jnp.exp(-dist2 / (2.0 * (radius / 3.0) ** 2))
    highpass = 1.0 - lowpass
    return jnp.broadcast_to(highpass, (C_out, H, W)).astype(jnp.float32)


def init_params(key, C_in, C_out, H, W):
    k1, k2, k3, k4 = jax.random.split(key, 4)
    return {
        'w1': 0.2 * jax.random.normal(k1, (C_out, C_in, 3, 3), jnp.float32),
        'b1': 0.05 * jax.random.normal(k2, (C_out,), jnp.float32),
        'w2': 0.1 * jax.random.normal(k3, (C_out, C_out, 3, 3), jnp.float32),
        'b2': 0.05 * jax.random.normal(k4, (C_out,), jnp.float32),
        # module __init__ uses alpha=0.0; non-zero here so the residual branch
        # is actually exercised (still a deterministic init).
        'alpha': jnp.float32(0.3),
        'filter': make_highpass_filter(C_out, H, W),   # 'highpass' init
    }


def fourier_feature_extractor(x, params, *, batch_tile=None):
    """Pallas implementation of FourierFeatureExtractor.forward (NCHW)."""
    B, C_in, H, W = x.shape
    HW = H * W
    w1, b1 = params['w1'], params['b1']
    w2, b2 = params['w2'], params['b2']
    filt = params['filter']                  # (C_out, H, W) real filter
    alpha = params['alpha']
    C_out = w1.shape[0]

    # Batch tile: aim for BT*C_out ~ 128 MXU rows when the batch allows; for
    # small batches (B=2 here) the whole batch goes in a single grid step.
    if batch_tile is None:
        batch_tile = max(1, min(B, -(-128 // C_out)))
    BT = batch_tile
    NT = -(-B // BT)
    B_pad = NT * BT

    # im2col weight layout: row o, column k*C + c, k = (dy+1)*3 + (dx+1);
    # bias folded as the trailing column (ones-row tap in the kernel).
    w1_mat = jnp.transpose(w1, (0, 2, 3, 1)).reshape(C_out, 9 * C_in)
    w2_mat = jnp.transpose(w2, (0, 2, 3, 1)).reshape(C_out, 9 * C_out)
    w1_aug = jnp.concatenate([w1_mat, b1.reshape(C_out, 1)],
                             axis=1).astype(jnp.float32)
    w2_aug = jnp.concatenate([w2_mat, b2.reshape(C_out, 1)],
                             axis=1).astype(jnp.float32)

    masks = _make_tap_masks(H, W)
    fwd_bf16, inv_bf16 = _build_dft_operators(H, W)

    filt_flat = filt.reshape(C_out, HW)
    scale = 1.0 + alpha * filt_flat                      # precomputed here
    scale_cat = jnp.concatenate([scale, scale], axis=1)  # (C_out, 2*HW)
    scale_tiled = jnp.tile(scale_cat, (BT, 1)).astype(jnp.float32)

    x_flat = x.reshape(B, C_in, HW).astype(jnp.float32)  # lane-dense input
    if B_pad > B:
        x_flat = jnp.pad(x_flat, ((0, B_pad - B), (0, 0), (0, 0)))
    x_pack = x_flat.reshape(NT, BT * C_in, HW)

    kernel = functools.partial(fused_fourier_kernel, H=H, W=W, BT=BT,
                               C_in=C_in, C_out=C_out)

    m_rows = B_pad * C_out
    flops = (2 * m_rows * HW * (2 * HW)                      # forward DFT
             + 2 * m_rows * (2 * HW) * HW                    # inverse DFT
             + 2 * B_pad * C_out * (9 * C_in + 1) * HW       # conv1
             + 2 * B_pad * C_out * (9 * C_out + 1) * HW)     # conv2
    bytes_accessed = (4 * B_pad * C_in * HW                  # x
                      + 4 * 9 * HW                           # masks
                      + 4 * (C_out * (9 * C_in + 1) + C_out * (9 * C_out + 1))
                      + 4 * BT * C_out * 2 * HW              # scale
                      + 2 * (HW * 2 * HW) * 2                # bf16 DFT operators
                      + 4 * m_rows * 4 * HW)                 # three outputs

    spat, fb, fspat = pl.pallas_call(
        kernel,
        out_shape=(
            jax.ShapeDtypeStruct((NT, BT * C_out, HW), jnp.float32),
            jax.ShapeDtypeStruct((NT, BT * C_out, 2 * HW), jnp.float32),
            jax.ShapeDtypeStruct((NT, BT * C_out, HW), jnp.float32),
        ),
        grid=(NT,),
        in_specs=[
            pl.BlockSpec((None, BT * C_in, HW), lambda t: (t, 0, 0)),   # x
            pl.BlockSpec((9, HW), lambda t: (0, 0)),                    # masks
            pl.BlockSpec((C_out, 9 * C_in + 1), lambda t: (0, 0)),      # w1+b1
            pl.BlockSpec((C_out, 9 * C_out + 1), lambda t: (0, 0)),     # w2+b2
            pl.BlockSpec((BT * C_out, 2 * HW), lambda t: (0, 0)),       # scale
            pl.BlockSpec((HW, 2 * HW), lambda t: (0, 0)),               # fwd DFT
            pl.BlockSpec((2 * HW, HW), lambda t: (0, 0)),               # inv DFT
        ],
        out_specs=(
            pl.BlockSpec((None, BT * C_out, HW), lambda t: (t, 0, 0)),
            pl.BlockSpec((None, BT * C_out, 2 * HW), lambda t: (t, 0, 0)),
            pl.BlockSpec((None, BT * C_out, HW), lambda t: (t, 0, 0)),
        ),
        compiler_params=pltpu.CompilerParams(
            dimension_semantics=("parallel",),
            vmem_limit_bytes=32 * 1024 * 1024),
        cost_estimate=pl.CostEstimate(flops=flops, transcendentals=0,
                                      bytes_accessed=bytes_accessed),
    )(x_pack, masks, w1_aug, w2_aug, scale_tiled, fwd_bf16, inv_bf16)

    spat = spat.reshape(B_pad, C_out, HW)[:B]
    fb = fb.reshape(B_pad, C_out, 2 * HW)[:B]
    fspat = fspat.reshape(B_pad, C_out, HW)[:B]

    spatial = spat.reshape(B, C_out, H, W)
    fft_r = fb[..., :HW].reshape(B, C_out, H, W)
    fft_i = fb[..., HW:].reshape(B, C_out, H, W)
    freq = lax.complex(fft_r, fft_i)
    filtered_freq = filt[None] * freq                    # computed in wrapper
    return {
        'spatial_features': spatial,
        'freq_features': freq,
        'filtered_freq': filtered_freq,
        'filtered_spatial': fspat.reshape(B, C_out, H, W),
    }


# -------------------------------- reference ---------------------------------

def reference_forward(x, params):
    w1, b1, w2, b2 = params['w1'], params['b1'], params['w2'], params['b2']
    filt, alpha = params['filter'], params['alpha']

    def conv(h, w, b):
        y = lax.conv_general_dilated(
            h, w, window_strides=(1, 1), padding='SAME',
            dimension_numbers=('NCHW', 'OIHW', 'NCHW'),
            precision=lax.Precision.HIGHEST)
        return jnp.maximum(y + b[None, :, None, None], 0.0)

    s = conv(conv(x, w1, b1), w2, b2)
    fft = jnp.fft.fftshift(jnp.fft.fft2(s), axes=(-2, -1))
    filtered = filt[None] * fft
    res = fft + filtered * alpha
    spat = jnp.real(jnp.fft.ifft2(jnp.fft.ifftshift(res, axes=(-2, -1))))
    return {'spatial_features': s, 'freq_features': fft,
            'filtered_freq': filtered, 'filtered_spatial': spat}


def _check(name, got, want, tol):
    """max |got-want| relative to max |want| (robust for bf16 MXU paths)."""
    got = np.asarray(got)
    want = np.asarray(want)
    scale = max(float(np.max(np.abs(want))), 1e-6)
    err = float(np.max(np.abs(got - want))) / scale
    if not err < tol:
        raise AssertionError(f"{name}: rel-to-max error {err:.3e} >= {tol:.1e}")


# ----------------------------------- main ------------------------------------

if __name__ == "__main__":
    B, C_in, C_out, H, W = 2, 3, 8, 16, 16
    key = jax.random.PRNGKey(0)
    pkey, xkey = jax.random.split(key)
    params = init_params(pkey, C_in, C_out, H, W)
    x = jax.random.normal(xkey, (B, C_in, H, W), jnp.float32)

    out = jax.jit(fourier_feature_extractor)(x, params)
    out = jax.block_until_ready(out)

    ref = reference_forward(x, params)
    # Convs run in f32 (tight); DFT matmuls use bf16 operands with f32
    # accumulation, so frequency/inverse outputs carry bf16-level error.
    _check('spatial_features', out['spatial_features'],
           ref['spatial_features'], 1e-3)
    _check('freq_features', out['freq_features'], ref['freq_features'], 2e-2)
    _check('filtered_freq', out['filtered_freq'], ref['filtered_freq'], 2e-2)
    _check('filtered_spatial', out['filtered_spatial'],
           ref['filtered_spatial'], 3e-2)
    print("KERNEL_OK")
</pallas_src>

<mosaic_0001>
module attributes {stable_mosaic.version = 11 : i64} {
  func.func @fused_fourier_kernel(%arg0: i32, %arg1: memref<1x6x256xf32, #tpu.memory_space<vmem>>, %arg2: memref<9x256xf32, #tpu.memory_space<vmem>>, %arg3: memref<8x28xf32, #tpu.memory_space<vmem>>, %arg4: memref<8x73xf32, #tpu.memory_space<vmem>>, %arg5: memref<16x512xf32, #tpu.memory_space<vmem>>, %arg6: memref<256x512xbf16, #tpu.memory_space<vmem>>, %arg7: memref<512x256xbf16, #tpu.memory_space<vmem>>, %arg8: memref<1x16x256xf32, #tpu.memory_space<vmem>>, %arg9: memref<1x16x512xf32, #tpu.memory_space<vmem>>, %arg10: memref<1x16x256xf32, #tpu.memory_space<vmem>>) attributes {dimension_semantics = [#tpu.dimension_semantics<parallel>], iteration_bounds = array<i64: 1>, scalar_prefetch = 0 : i64, scratch_operands = 0 : i64, tpu.core_type = #tpu.core_type<tc>, window_params = [{transform_indices = @transform_0, window_bounds = array<i64: 1, 6, 256>}, {pipeline_mode = #tpu.pipeline_mode<synchronous>, transform_indices = @transform_1, window_bounds = array<i64: 9, 256>}, {pipeline_mode = #tpu.pipeline_mode<synchronous>, transform_indices = @transform_2, window_bounds = array<i64: 8, 28>}, {pipeline_mode = #tpu.pipeline_mode<synchronous>, transform_indices = @transform_3, window_bounds = array<i64: 8, 73>}, {pipeline_mode = #tpu.pipeline_mode<synchronous>, transform_indices = @transform_4, window_bounds = array<i64: 16, 512>}, {pipeline_mode = #tpu.pipeline_mode<synchronous>, transform_indices = @transform_5, window_bounds = array<i64: 256, 512>}, {pipeline_mode = #tpu.pipeline_mode<synchronous>, transform_indices = @transform_6, window_bounds = array<i64: 512, 256>}, {transform_indices = @transform_7, window_bounds = array<i64: 1, 16, 256>}, {transform_indices = @transform_8, window_bounds = array<i64: 1, 16, 512>}, {transform_indices = @transform_9, window_bounds = array<i64: 1, 16, 256>}]} {
    %c0 = arith.constant 0 : index
    %c0_0 = arith.constant 0 : index
    %0 = vector.load %arg2[%c0, %c0_0] : memref<9x256xf32, #tpu.memory_space<vmem>>, vector<9x256xf32>
    %1 = vector.extract_strided_slice %0 {offsets = [0, 0], sizes = [1, 256], strides = [1, 1]} : vector<9x256xf32> to vector<1x256xf32>
    %2 = vector.extract_strided_slice %0 {offsets = [1, 0], sizes = [1, 256], strides = [1, 1]} : vector<9x256xf32> to vector<1x256xf32>
    %3 = vector.extract_strided_slice %0 {offsets = [2, 0], sizes = [1, 256], strides = [1, 1]} : vector<9x256xf32> to vector<1x256xf32>
    %4 = vector.extract_strided_slice %0 {offsets = [3, 0], sizes = [1, 256], strides = [1, 1]} : vector<9x256xf32> to vector<1x256xf32>
    %5 = vector.extract_strided_slice %0 {offsets = [4, 0], sizes = [1, 256], strides = [1, 1]} : vector<9x256xf32> to vector<1x256xf32>
    %6 = vector.extract_strided_slice %0 {offsets = [5, 0], sizes = [1, 256], strides = [1, 1]} : vector<9x256xf32> to vector<1x256xf32>
    %7 = vector.extract_strided_slice %0 {offsets = [6, 0], sizes = [1, 256], strides = [1, 1]} : vector<9x256xf32> to vector<1x256xf32>
    %8 = vector.extract_strided_slice %0 {offsets = [7, 0], sizes = [1, 256], strides = [1, 1]} : vector<9x256xf32> to vector<1x256xf32>
    %9 = vector.extract_strided_slice %0 {offsets = [8, 0], sizes = [1, 256], strides = [1, 1]} : vector<9x256xf32> to vector<1x256xf32>
    %cst = arith.constant 1.000000e+00 : f32
    %10 = vector.broadcast %cst : f32 to vector<1x256xf32>
    %c0_1 = arith.constant 0 : index
    %c0_2 = arith.constant 0 : index
    %11 = vector.load %arg3[%c0_1, %c0_2] : memref<8x28xf32, #tpu.memory_space<vmem>>, vector<8x28xf32>
    %c0_3 = arith.constant 0 : index
    %c0_4 = arith.constant 0 : index
    %12 = vector.load %arg4[%c0_3, %c0_4] : memref<8x73xf32, #tpu.memory_space<vmem>>, vector<8x73xf32>
    %c0_5 = arith.constant 0 : index
    %c0_6 = arith.constant 0 : index
    %c0_7 = arith.constant 0 : index
    %13 = vector.load %arg1[%c0_5, %c0_6, %c0_7] : memref<1x6x256xf32, #tpu.memory_space<vmem>>, vector<1x3x256xf32>
    %14 = vector.shape_cast %13 : vector<1x3x256xf32> to vector<3x256xf32>
    %15 = vector.extract_strided_slice %14 {offsets = [0, 239], sizes = [3, 17], strides = [1, 1]} : vector<3x256xf32> to vector<3x17xf32>
    %16 = vector.extract_strided_slice %14 {offsets = [0, 0], sizes = [3, 239], strides = [1, 1]} : vector<3x256xf32> to vector<3x239xf32>
    %17 = tpu.concatenate %15, %16 in 1 : vector<3x17xf32>, vector<3x239xf32> -> vector<3x256xf32>
    %18 = vector.broadcast %1 : vector<1x256xf32> to vector<3x256xf32>
    %19 = arith.mulf %17, %18 : vector<3x256xf32>
    %20 = vector.extract_strided_slice %14 {offsets = [0, 240], sizes = [3, 16], strides = [1, 1]} : vector<3x256xf32> to vector<3x16xf32>
    %21 = vector.extract_strided_slice %14 {offsets = [0, 0], sizes = [3, 240], strides = [1, 1]} : vector<3x256xf32> to vector<3x240xf32>
    %22 = tpu.concatenate %20, %21 in 1 : vector<3x16xf32>, vector<3x240xf32> -> vector<3x256xf32>
    %23 = vector.broadcast %2 : vector<1x256xf32> to vector<3x256xf32>
    %24 = arith.mulf %22, %23 : vector<3x256xf32>
    %25 = vector.extract_strided_slice %14 {offsets = [0, 241], sizes = [3, 15], strides = [1, 1]} : vector<3x256xf32> to vector<3x15xf32>
    %26 = vector.extract_strided_slice %14 {offsets = [0, 0], sizes = [3, 241], strides = [1, 1]} : vector<3x256xf32> to vector<3x241xf32>
    %27 = tpu.concatenate %25, %26 in 1 : vector<3x15xf32>, vector<3x241xf32> -> vector<3x256xf32>
    %28 = vector.broadcast %3 : vector<1x256xf32> to vector<3x256xf32>
    %29 = arith.mulf %27, %28 : vector<3x256xf32>
    %30 = vector.extract_strided_slice %14 {offsets = [0, 255], sizes = [3, 1], strides = [1, 1]} : vector<3x256xf32> to vector<3x1xf32>
    %31 = vector.extract_strided_slice %14 {offsets = [0, 0], sizes = [3, 255], strides = [1, 1]} : vector<3x256xf32> to vector<3x255xf32>
    %32 = tpu.concatenate %30, %31 in 1 : vector<3x1xf32>, vector<3x255xf32> -> vector<3x256xf32>
    %33 = vector.broadcast %4 : vector<1x256xf32> to vector<3x256xf32>
    %34 = arith.mulf %32, %33 : vector<3x256xf32>
    %35 = vector.broadcast %5 : vector<1x256xf32> to vector<3x256xf32>
    %36 = arith.mulf %14, %35 : vector<3x256xf32>
    %37 = vector.extract_strided_slice %14 {offsets = [0, 1], sizes = [3, 255], strides = [1, 1]} : vector<3x256xf32> to vector<3x255xf32>
    %38 = vector.extract_strided_slice %14 {offsets = [0, 0], sizes = [3, 1], strides = [1, 1]} : vector<3x256xf32> to vector<3x1xf32>
    %39 = tpu.concatenate %37, %38 in 1 : vector<3x255xf32>, vector<3x1xf32> -> vector<3x256xf32>
    %40 = vector.broadcast %6 : vector<1x256xf32> to vector<3x256xf32>
    %41 = arith.mulf %39, %40 : vector<3x256xf32>
    %42 = vector.extract_strided_slice %14 {offsets = [0, 15], sizes = [3, 241], strides = [1, 1]} : vector<3x256xf32> to vector<3x241xf32>
    %43 = vector.extract_strided_slice %14 {offsets = [0, 0], sizes = [3, 15], strides = [1, 1]} : vector<3x256xf32> to vector<3x15xf32>
    %44 = tpu.concatenate %42, %43 in 1 : vector<3x241xf32>, vector<3x15xf32> -> vector<3x256xf32>
    %45 = vector.broadcast %7 : vector<1x256xf32> to vector<3x256xf32>
    %46 = arith.mulf %44, %45 : vector<3x256xf32>
    %47 = vector.extract_strided_slice %14 {offsets = [0, 16], sizes = [3, 240], strides = [1, 1]} : vector<3x256xf32> to vector<3x240xf32>
    %48 = vector.extract_strided_slice %14 {offsets = [0, 0], sizes = [3, 16], strides = [1, 1]} : vector<3x256xf32> to vector<3x16xf32>
    %49 = tpu.concatenate %47, %48 in 1 : vector<3x240xf32>, vector<3x16xf32> -> vector<3x256xf32>
    %50 = vector.broadcast %8 : vector<1x256xf32> to vector<3x256xf32>
    %51 = arith.mulf %49, %50 : vector<3x256xf32>
    %52 = vector.extract_strided_slice %14 {offsets = [0, 17], sizes = [3, 239], strides = [1, 1]} : vector<3x256xf32> to vector<3x239xf32>
    %53 = vector.extract_strided_slice %14 {offsets = [0, 0], sizes = [3, 17], strides = [1, 1]} : vector<3x256xf32> to vector<3x17xf32>
    %54 = tpu.concatenate %52, %53 in 1 : vector<3x239xf32>, vector<3x17xf32> -> vector<3x256xf32>
    %55 = vector.broadcast %9 : vector<1x256xf32> to vector<3x256xf32>
    %56 = arith.mulf %54, %55 : vector<3x256xf32>
    %57 = tpu.concatenate %19, %24, %29, %34, %36, %41, %46, %51, %56, %10 in 0 : vector<3x256xf32>, vector<3x256xf32>, vector<3x256xf32>, vector<3x256xf32>, vector<3x256xf32>, vector<3x256xf32>, vector<3x256xf32>, vector<3x256xf32>, vector<3x256xf32>, vector<1x256xf32> -> vector<28x256xf32>
    %cst_8 = arith.constant dense<0.000000e+00> : vector<8x256xf32>
    %58 = tpu.matmul %11, %57, %cst_8 {dimension_numbers = #tpu.dot_dimension_numbers<[1], [0], [0], [1], [0, 0, 1, 1], [], []>} : vector<8x28xf32>, vector<28x256xf32>, vector<8x256xf32> -> vector<8x256xf32>
    %cst_9 = arith.constant 0.000000e+00 : f32
    %59 = vector.broadcast %cst_9 : f32 to vector<8x256xf32>
    %60 = arith.maximumf %58, %59 : vector<8x256xf32>
    %61 = vector.extract_strided_slice %60 {offsets = [0, 239], sizes = [8, 17], strides = [1, 1]} : vector<8x256xf32> to vector<8x17xf32>
    %62 = vector.extract_strided_slice %60 {offsets = [0, 0], sizes = [8, 239], strides = [1, 1]} : vector<8x256xf32> to vector<8x239xf32>
    %63 = tpu.concatenate %61, %62 in 1 : vector<8x17xf32>, vector<8x239xf32> -> vector<8x256xf32>
    %64 = vector.broadcast %1 : vector<1x256xf32> to vector<8x256xf32>
    %65 = arith.mulf %63, %64 : vector<8x256xf32>
    %66 = vector.extract_strided_slice %60 {offsets = [0, 240], sizes = [8, 16], strides = [1, 1]} : vector<8x256xf32> to vector<8x16xf32>
    %67 = vector.extract_strided_slice %60 {offsets = [0, 0], sizes = [8, 240], strides = [1, 1]} : vector<8x256xf32> to vector<8x240xf32>
    %68 = tpu.concatenate %66, %67 in 1 : vector<8x16xf32>, vector<8x240xf32> -> vector<8x256xf32>
    %69 = vector.broadcast %2 : vector<1x256xf32> to vector<8x256xf32>
    %70 = arith.mulf %68, %69 : vector<8x256xf32>
    %71 = vector.extract_strided_slice %60 {offsets = [0, 241], sizes = [8, 15], strides = [1, 1]} : vector<8x256xf32> to vector<8x15xf32>
    %72 = vector.extract_strided_slice %60 {offsets = [0, 0], sizes = [8, 241], strides = [1, 1]} : vector<8x256xf32> to vector<8x241xf32>
    %73 = tpu.concatenate %71, %72 in 1 : vector<8x15xf32>, vector<8x241xf32> -> vector<8x256xf32>
    %74 = vector.broadcast %3 : vector<1x256xf32> to vector<8x256xf32>
    %75 = arith.mulf %73, %74 : vector<8x256xf32>
    %76 = vector.extract_strided_slice %60 {offsets = [0, 255], sizes = [8, 1], strides = [1, 1]} : vector<8x256xf32> to vector<8x1xf32>
    %77 = vector.extract_strided_slice %60 {offsets = [0, 0], sizes = [8, 255], strides = [1, 1]} : vector<8x256xf32> to vector<8x255xf32>
    %78 = tpu.concatenate %76, %77 in 1 : vector<8x1xf32>, vector<8x255xf32> -> vector<8x256xf32>
    %79 = vector.broadcast %4 : vector<1x256xf32> to vector<8x256xf32>
    %80 = arith.mulf %78, %79 : vector<8x256xf32>
    %81 = vector.broadcast %5 : vector<1x256xf32> to vector<8x256xf32>
    %82 = arith.mulf %60, %81 : vector<8x256xf32>
    %83 = vector.extract_strided_slice %60 {offsets = [0, 1], sizes = [8, 255], strides = [1, 1]} : vector<8x256xf32> to vector<8x255xf32>
    %84 = vector.extract_strided_slice %60 {offsets = [0, 0], sizes = [8, 1], strides = [1, 1]} : vector<8x256xf32> to vector<8x1xf32>
    %85 = tpu.concatenate %83, %84 in 1 : vector<8x255xf32>, vector<8x1xf32> -> vector<8x256xf32>
    %86 = vector.broadcast %6 : vector<1x256xf32> to vector<8x256xf32>
    %87 = arith.mulf %85, %86 : vector<8x256xf32>
    %88 = vector.extract_strided_slice %60 {offsets = [0, 15], sizes = [8, 241], strides = [1, 1]} : vector<8x256xf32> to vector<8x241xf32>
    %89 = vector.extract_strided_slice %60 {offsets = [0, 0], sizes = [8, 15], strides = [1, 1]} : vector<8x256xf32> to vector<8x15xf32>
    %90 = tpu.concatenate %88, %89 in 1 : vector<8x241xf32>, vector<8x15xf32> -> vector<8x256xf32>
    %91 = vector.broadcast %7 : vector<1x256xf32> to vector<8x256xf32>
    %92 = arith.mulf %90, %91 : vector<8x256xf32>
    %93 = vector.extract_strided_slice %60 {offsets = [0, 16], sizes = [8, 240], strides = [1, 1]} : vector<8x256xf32> to vector<8x240xf32>
    %94 = vector.extract_strided_slice %60 {offsets = [0, 0], sizes = [8, 16], strides = [1, 1]} : vector<8x256xf32> to vector<8x16xf32>
    %95 = tpu.concatenate %93, %94 in 1 : vector<8x240xf32>, vector<8x16xf32> -> vector<8x256xf32>
    %96 = vector.broadcast %8 : vector<1x256xf32> to vector<8x256xf32>
    %97 = arith.mulf %95, %96 : vector<8x256xf32>
    %98 = vector.extract_strided_slice %60 {offsets = [0, 17], sizes = [8, 239], strides = [1, 1]} : vector<8x256xf32> to vector<8x239xf32>
    %99 = vector.extract_strided_slice %60 {offsets = [0, 0], sizes = [8, 17], strides = [1, 1]} : vector<8x256xf32> to vector<8x17xf32>
    %100 = tpu.concatenate %98, %99 in 1 : vector<8x239xf32>, vector<8x17xf32> -> vector<8x256xf32>
    %101 = vector.broadcast %9 : vector<1x256xf32> to vector<8x256xf32>
    %102 = arith.mulf %100, %101 : vector<8x256xf32>
    %103 = tpu.concatenate %65, %70, %75, %80, %82, %87, %92, %97, %102, %10 in 0 : vector<8x256xf32>, vector<8x256xf32>, vector<8x256xf32>, vector<8x256xf32>, vector<8x256xf32>, vector<8x256xf32>, vector<8x256xf32>, vector<8x256xf32>, vector<8x256xf32>, vector<1x256xf32> -> vector<73x256xf32>
    %cst_10 = arith.constant dense<0.000000e+00> : vector<8x256xf32>
    %104 = tpu.matmul %12, %103, %cst_10 {dimension_numbers = #tpu.dot_dimension_numbers<[1], [0], [0], [1], [0, 0, 1, 1], [], []>} : vector<8x73xf32>, vector<73x256xf32>, vector<8x256xf32> -> vector<8x256xf32>
    %cst_11 = arith.constant 0.000000e+00 : f32
    %105 = vector.broadcast %cst_11 : f32 to vector<8x256xf32>
    %106 = arith.maximumf %104, %105 : vector<8x256xf32>
    %c0_12 = arith.constant 0 : index
    %c3 = arith.constant 3 : index
    %c0_13 = arith.constant 0 : index
    %107 = vector.load %arg1[%c0_12, %c3, %c0_13] : memref<1x6x256xf32, #tpu.memory_space<vmem>>, vector<1x3x256xf32>
    %108 = vector.shape_cast %107 : vector<1x3x256xf32> to vector<3x256xf32>
    %109 = vector.extract_strided_slice %108 {offsets = [0, 239], sizes = [3, 17], strides = [1, 1]} : vector<3x256xf32> to vector<3x17xf32>
    %110 = vector.extract_strided_slice %108 {offsets = [0, 0], sizes = [3, 239], strides = [1, 1]} : vector<3x256xf32> to vector<3x239xf32>
    %111 = tpu.concatenate %109, %110 in 1 : vector<3x17xf32>, vector<3x239xf32> -> vector<3x256xf32>
    %112 = vector.broadcast %1 : vector<1x256xf32> to vector<3x256xf32>
    %113 = arith.mulf %111, %112 : vector<3x256xf32>
    %114 = vector.extract_strided_slice %108 {offsets = [0, 240], sizes = [3, 16], strides = [1, 1]} : vector<3x256xf32> to vector<3x16xf32>
    %115 = vector.extract_strided_slice %108 {offsets = [0, 0], sizes = [3, 240], strides = [1, 1]} : vector<3x256xf32> to vector<3x240xf32>
    %116 = tpu.concatenate %114, %115 in 1 : vector<3x16xf32>, vector<3x240xf32> -> vector<3x256xf32>
    %117 = vector.broadcast %2 : vector<1x256xf32> to vector<3x256xf32>
    %118 = arith.mulf %116, %117 : vector<3x256xf32>
    %119 = vector.extract_strided_slice %108 {offsets = [0, 241], sizes = [3, 15], strides = [1, 1]} : vector<3x256xf32> to vector<3x15xf32>
    %120 = vector.extract_strided_slice %108 {offsets = [0, 0], sizes = [3, 241], strides = [1, 1]} : vector<3x256xf32> to vector<3x241xf32>
    %121 = tpu.concatenate %119, %120 in 1 : vector<3x15xf32>, vector<3x241xf32> -> vector<3x256xf32>
    %122 = vector.broadcast %3 : vector<1x256xf32> to vector<3x256xf32>
    %123 = arith.mulf %121, %122 : vector<3x256xf32>
    %124 = vector.extract_strided_slice %108 {offsets = [0, 255], sizes = [3, 1], strides = [1, 1]} : vector<3x256xf32> to vector<3x1xf32>
    %125 = vector.extract_strided_slice %108 {offsets = [0, 0], sizes = [3, 255], strides = [1, 1]} : vector<3x256xf32> to vector<3x255xf32>
    %126 = tpu.concatenate %124, %125 in 1 : vector<3x1xf32>, vector<3x255xf32> -> vector<3x256xf32>
    %127 = vector.broadcast %4 : vector<1x256xf32> to vector<3x256xf32>
    %128 = arith.mulf %126, %127 : vector<3x256xf32>
    %129 = vector.broadcast %5 : vector<1x256xf32> to vector<3x256xf32>
    %130 = arith.mulf %108, %129 : vector<3x256xf32>
    %131 = vector.extract_strided_slice %108 {offsets = [0, 1], sizes = [3, 255], strides = [1, 1]} : vector<3x256xf32> to vector<3x255xf32>
    %132 = vector.extract_strided_slice %108 {offsets = [0, 0], sizes = [3, 1], strides = [1, 1]} : vector<3x256xf32> to vector<3x1xf32>
    %133 = tpu.concatenate %131, %132 in 1 : vector<3x255xf32>, vector<3x1xf32> -> vector<3x256xf32>
    %134 = vector.broadcast %6 : vector<1x256xf32> to vector<3x256xf32>
    %135 = arith.mulf %133, %134 : vector<3x256xf32>
    %136 = vector.extract_strided_slice %108 {offsets = [0, 15], sizes = [3, 241], strides = [1, 1]} : vector<3x256xf32> to vector<3x241xf32>
    %137 = vector.extract_strided_slice %108 {offsets = [0, 0], sizes = [3, 15], strides = [1, 1]} : vector<3x256xf32> to vector<3x15xf32>
    %138 = tpu.concatenate %136, %137 in 1 : vector<3x241xf32>, vector<3x15xf32> -> vector<3x256xf32>
    %139 = vector.broadcast %7 : vector<1x256xf32> to vector<3x256xf32>
    %140 = arith.mulf %138, %139 : vector<3x256xf32>
    %141 = vector.extract_strided_slice %108 {offsets = [0, 16], sizes = [3, 240], strides = [1, 1]} : vector<3x256xf32> to vector<3x240xf32>
    %142 = vector.extract_strided_slice %108 {offsets = [0, 0], sizes = [3, 16], strides = [1, 1]} : vector<3x256xf32> to vector<3x16xf32>
    %143 = tpu.concatenate %141, %142 in 1 : vector<3x240xf32>, vector<3x16xf32> -> vector<3x256xf32>
    %144 = vector.broadcast %8 : vector<1x256xf32> to vector<3x256xf32>
    %145 = arith.mulf %143, %144 : vector<3x256xf32>
    %146 = vector.extract_strided_slice %108 {offsets = [0, 17], sizes = [3, 239], strides = [1, 1]} : vector<3x256xf32> to vector<3x239xf32>
    %147 = vector.extract_strided_slice %108 {offsets = [0, 0], sizes = [3, 17], strides = [1, 1]} : vector<3x256xf32> to vector<3x17xf32>
    %148 = tpu.concatenate %146, %147 in 1 : vector<3x239xf32>, vector<3x17xf32> -> vector<3x256xf32>
    %149 = vector.broadcast %9 : vector<1x256xf32> to vector<3x256xf32>
    %150 = arith.mulf %148, %149 : vector<3x256xf32>
    %151 = tpu.concatenate %113, %118, %123, %128, %130, %135, %140, %145, %150, %10 in 0 : vector<3x256xf32>, vector<3x256xf32>, vector<3x256xf32>, vector<3x256xf32>, vector<3x256xf32>, vector<3x256xf32>, vector<3x256xf32>, vector<3x256xf32>, vector<3x256xf32>, vector<1x256xf32> -> vector<28x256xf32>
    %cst_14 = arith.constant dense<0.000000e+00> : vector<8x256xf32>
    %152 = tpu.matmul %11, %151, %cst_14 {dimension_numbers = #tpu.dot_dimension_numbers<[1], [0], [0], [1], [0, 0, 1, 1], [], []>} : vector<8x28xf32>, vector<28x256xf32>, vector<8x256xf32> -> vector<8x256xf32>
    %cst_15 = arith.constant 0.000000e+00 : f32
    %153 = vector.broadcast %cst_15 : f32 to vector<8x256xf32>
    %154 = arith.maximumf %152, %153 : vector<8x256xf32>
    %155 = vector.extract_strided_slice %154 {offsets = [0, 239], sizes = [8, 17], strides = [1, 1]} : vector<8x256xf32> to vector<8x17xf32>
    %156 = vector.extract_strided_slice %154 {offsets = [0, 0], sizes = [8, 239], strides = [1, 1]} : vector<8x256xf32> to vector<8x239xf32>
    %157 = tpu.concatenate %155, %156 in 1 : vector<8x17xf32>, vector<8x239xf32> -> vector<8x256xf32>
    %158 = vector.broadcast %1 : vector<1x256xf32> to vector<8x256xf32>
    %159 = arith.mulf %157, %158 : vector<8x256xf32>
    %160 = vector.extract_strided_slice %154 {offsets = [0, 240], sizes = [8, 16], strides = [1, 1]} : vector<8x256xf32> to vector<8x16xf32>
    %161 = vector.extract_strided_slice %154 {offsets = [0, 0], sizes = [8, 240], strides = [1, 1]} : vector<8x256xf32> to vector<8x240xf32>
    %162 = tpu.concatenate %160, %161 in 1 : vector<8x16xf32>, vector<8x240xf32> -> vector<8x256xf32>
    %163 = vector.broadcast %2 : vector<1x256xf32> to vector<8x256xf32>
    %164 = arith.mulf %162, %163 : vector<8x256xf32>
    %165 = vector.extract_strided_slice %154 {offsets = [0, 241], sizes = [8, 15], strides = [1, 1]} : vector<8x256xf32> to vector<8x15xf32>
    %166 = vector.extract_strided_slice %154 {offsets = [0, 0], sizes = [8, 241], strides = [1, 1]} : vector<8x256xf32> to vector<8x241xf32>
    %167 = tpu.concatenate %165, %166 in 1 : vector<8x15xf32>, vector<8x241xf32> -> vector<8x256xf32>
    %168 = vector.broadcast %3 : vector<1x256xf32> to vector<8x256xf32>
    %169 = arith.mulf %167, %168 : vector<8x256xf32>
    %170 = vector.extract_strided_slice %154 {offsets = [0, 255], sizes = [8, 1], strides = [1, 1]} : vector<8x256xf32> to vector<8x1xf32>
    %171 = vector.extract_strided_slice %154 {offsets = [0, 0], sizes = [8, 255], strides = [1, 1]} : vector<8x256xf32> to vector<8x255xf32>
    %172 = tpu.concatenate %170, %171 in 1 : vector<8x1xf32>, vector<8x255xf32> -> vector<8x256xf32>
    %173 = vector.broadcast %4 : vector<1x256xf32> to vector<8x256xf32>
    %174 = arith.mulf %172, %173 : vector<8x256xf32>
    %175 = vector.broadcast %5 : vector<1x256xf32> to vector<8x256xf32>
    %176 = arith.mulf %154, %175 : vector<8x256xf32>
    %177 = vector.extract_strided_slice %154 {offsets = [0, 1], sizes = [8, 255], strides = [1, 1]} : vector<8x256xf32> to vector<8x255xf32>
    %178 = vector.extract_strided_slice %154 {offsets = [0, 0], sizes = [8, 1], strides = [1, 1]} : vector<8x256xf32> to vector<8x1xf32>
    %179 = tpu.concatenate %177, %178 in 1 : vector<8x255xf32>, vector<8x1xf32> -> vector<8x256xf32>
    %180 = vector.broadcast %6 : vector<1x256xf32> to vector<8x256xf32>
    %181 = arith.mulf %179, %180 : vector<8x256xf32>
    %182 = vector.extract_strided_slice %154 {offsets = [0, 15], sizes = [8, 241], strides = [1, 1]} : vector<8x256xf32> to vector<8x241xf32>
    %183 = vector.extract_strided_slice %154 {offsets = [0, 0], sizes = [8, 15], strides = [1, 1]} : vector<8x256xf32> to vector<8x15xf32>
    %184 = tpu.concatenate %182, %183 in 1 : vector<8x241xf32>, vector<8x15xf32> -> vector<8x256xf32>
    %185 = vector.broadcast %7 : vector<1x256xf32> to vector<8x256xf32>
    %186 = arith.mulf %184, %185 : vector<8x256xf32>
    %187 = vector.extract_strided_slice %154 {offsets = [0, 16], sizes = [8, 240], strides = [1, 1]} : vector<8x256xf32> to vector<8x240xf32>
    %188 = vector.extract_strided_slice %154 {offsets = [0, 0], sizes = [8, 16], strides = [1, 1]} : vector<8x256xf32> to vector<8x16xf32>
    %189 = tpu.concatenate %187, %188 in 1 : vector<8x240xf32>, vector<8x16xf32> -> vector<8x256xf32>
    %190 = vector.broadcast %8 : vector<1x256xf32> to vector<8x256xf32>
    %191 = arith.mulf %189, %190 : vector<8x256xf32>
    %192 = vector.extract_strided_slice %154 {offsets = [0, 17], sizes = [8, 239], strides = [1, 1]} : vector<8x256xf32> to vector<8x239xf32>
    %193 = vector.extract_strided_slice %154 {offsets = [0, 0], sizes = [8, 17], strides = [1, 1]} : vector<8x256xf32> to vector<8x17xf32>
    %194 = tpu.concatenate %192, %193 in 1 : vector<8x239xf32>, vector<8x17xf32> -> vector<8x256xf32>
    %195 = vector.broadcast %9 : vector<1x256xf32> to vector<8x256xf32>
    %196 = arith.mulf %194, %195 : vector<8x256xf32>
    %197 = tpu.concatenate %159, %164, %169, %174, %176, %181, %186, %191, %196, %10 in 0 : vector<8x256xf32>, vector<8x256xf32>, vector<8x256xf32>, vector<8x256xf32>, vector<8x256xf32>, vector<8x256xf32>, vector<8x256xf32>, vector<8x256xf32>, vector<8x256xf32>, vector<1x256xf32> -> vector<73x256xf32>
    %cst_16 = arith.constant dense<0.000000e+00> : vector<8x256xf32>
    %198 = tpu.matmul %12, %197, %cst_16 {dimension_numbers = #tpu.dot_dimension_numbers<[1], [0], [0], [1], [0, 0, 1, 1], [], []>} : vector<8x73xf32>, vector<73x256xf32>, vector<8x256xf32> -> vector<8x256xf32>
    %cst_17 = arith.constant 0.000000e+00 : f32
    %199 = vector.broadcast %cst_17 : f32 to vector<8x256xf32>
    %200 = arith.maximumf %198, %199 : vector<8x256xf32>
    %201 = tpu.concatenate %106, %200 in 0 : vector<8x256xf32>, vector<8x256xf32> -> vector<16x256xf32>
    %c0_18 = arith.constant 0 : index
    %c0_19 = arith.constant 0 : index
    %c0_20 = arith.constant 0 : index
    %202 = vector.load %arg8[%c0_18, %c0_19, %c0_20] : memref<1x16x256xf32, #tpu.memory_space<vmem>>, vector<1x16x256xf32>
    %203 = vector.shape_cast %202 : vector<1x16x256xf32> to vector<16x256xf32>
    %204 = vector.shape_cast %201 : vector<16x256xf32> to vector<1x16x256xf32>
    tpu.vector_store %arg8[%c0_18, %c0_19, %c0_20], %204 {strides = array<i32>} : memref<1x16x256xf32, #tpu.memory_space<vmem>>, vector<1x16x256xf32>,
    %205 = arith.truncf %201 : vector<16x256xf32> to vector<16x256xbf16>
    %c0_21 = arith.constant 0 : index
    %c0_22 = arith.constant 0 : index
    %206 = vector.load %arg6[%c0_21, %c0_22] : memref<256x512xbf16, #tpu.memory_space<vmem>>, vector<256x512xbf16>
    %cst_23 = arith.constant dense<0.000000e+00> : vector<16x512xf32>
    %207 = tpu.matmul %205, %206, %cst_23 {dimension_numbers = #tpu.dot_dimension_numbers<[1], [0], [0], [1], [0, 0, 1, 1], [], []>} : vector<16x256xbf16>, vector<256x512xbf16>, vector<16x512xf32> -> vector<16x512xf32>
    %c0_24 = arith.constant 0 : index
    %c0_25 = arith.constant 0 : index
    %c0_26 = arith.constant 0 : index
    %208 = vector.load %arg9[%c0_24, %c0_25, %c0_26] : memref<1x16x512xf32, #tpu.memory_space<vmem>>, vector<1x16x512xf32>
    %209 = vector.shape_cast %208 : vector<1x16x512xf32> to vector<16x512xf32>
    %210 = vector.shape_cast %207 : vector<16x512xf32> to vector<1x16x512xf32>
    tpu.vector_store %arg9[%c0_24, %c0_25, %c0_26], %210 {strides = array<i32>} : memref<1x16x512xf32, #tpu.memory_space<vmem>>, vector<1x16x512xf32>,
    %c0_27 = arith.constant 0 : index
    %c0_28 = arith.constant 0 : index
    %211 = vector.load %arg5[%c0_27, %c0_28] : memref<16x512xf32, #tpu.memory_space<vmem>>, vector<16x512xf32>
    %212 = arith.mulf %207, %211 : vector<16x512xf32>
    %213 = arith.truncf %212 : vector<16x512xf32> to vector<16x512xbf16>
    %c0_29 = arith.constant 0 : index
    %c0_30 = arith.constant 0 : index
    %214 = vector.load %arg7[%c0_29, %c0_30] : memref<512x256xbf16, #tpu.memory_space<vmem>>, vector<512x256xbf16>
    %cst_31 = arith.constant dense<0.000000e+00> : vector<16x256xf32>
    %215 = tpu.matmul %213, %214, %cst_31 {dimension_numbers = #tpu.dot_dimension_numbers<[1], [0], [0], [1], [0, 0, 1, 1], [], []>} : vector<16x512xbf16>, vector<512x256xbf16>, vector<16x256xf32> -> vector<16x256xf32>
    %c0_32 = arith.constant 0 : index
    %c0_33 = arith.constant 0 : index
    %c0_34 = arith.constant 0 : index
    %216 = vector.load %arg10[%c0_32, %c0_33, %c0_34] : memref<1x16x256xf32, #tpu.memory_space<vmem>>, vector<1x16x256xf32>
    %217 = vector.shape_cast %216 : vector<1x16x256xf32> to vector<16x256xf32>
    %218 = vector.shape_cast %215 : vector<16x256xf32> to vector<1x16x256xf32>
    tpu.vector_store %arg10[%c0_32, %c0_33, %c0_34], %218 {strides = array<i32>} : memref<1x16x256xf32, #tpu.memory_space<vmem>>, vector<1x16x256xf32>,
    return
  }
  func.func @transform_0(%arg0: i32) -> (i32, i32, i32) {
    %c0_i32 = arith.constant 0 : i32
    %c0_i32_0 = arith.constant 0 : i32
    %c0_i32_1 = arith.constant 0 : i32
    return %arg0, %c0_i32, %c0_i32_0 : i32, i32, i32
  }
  func.func @transform_1(%arg0: i32) -> (i32, i32) {
    %c0_i32 = arith.constant 0 : i32
    %c0_i32_0 = arith.constant 0 : i32
    %c0_i32_1 = arith.constant 0 : i32
    return %c0_i32, %c0_i32_0 : i32, i32
  }
  func.func @transform_2(%arg0: i32) -> (i32, i32) {
    %c0_i32 = arith.constant 0 : i32
    %c0_i32_0 = arith.constant 0 : i32
    %c0_i32_1 = arith.constant 0 : i32
    return %c0_i32, %c0_i32_0 : i32, i32
  }
  func.func @transform_3(%arg0: i32) -> (i32, i32) {
    %c0_i32 = arith.constant 0 : i32
    %c0_i32_0 = arith.constant 0 : i32
    %c0_i32_1 = arith.constant 0 : i32
    return %c0_i32, %c0_i32_0 : i32, i32
  }
  func.func @transform_4(%arg0: i32) -> (i32, i32) {
    %c0_i32 = arith.constant 0 : i32
    %c0_i32_0 = arith.constant 0 : i32
    %c0_i32_1 = arith.constant 0 : i32
    return %c0_i32, %c0_i32_0 : i32, i32
  }
  func.func @transform_5(%arg0: i32) -> (i32, i32) {
    %c0_i32 = arith.constant 0 : i32
    %c0_i32_0 = arith.constant 0 : i32
    %c0_i32_1 = arith.constant 0 : i32
    return %c0_i32, %c0_i32_0 : i32, i32
  }
  func.func @transform_6(%arg0: i32) -> (i32, i32) {
    %c0_i32 = arith.constant 0 : i32
    %c0_i32_0 = arith.constant 0 : i32
    %c0_i32_1 = arith.constant 0 : i32
    return %c0_i32, %c0_i32_0 : i32, i32
  }
  func.func @transform_7(%arg0: i32) -> (i32, i32, i32) {
    %c0_i32 = arith.constant 0 : i32
    %c0_i32_0 = arith.constant 0 : i32
    %c0_i32_1 = arith.constant 0 : i32
    return %arg0, %c0_i32, %c0_i32_0 : i32, i32, i32
  }
  func.func @transform_8(%arg0: i32) -> (i32, i32, i32) {
    %c0_i32 = arith.constant 0 : i32
    %c0_i32_0 = arith.constant 0 : i32
    %c0_i32_1 = arith.constant 0 : i32
    return %arg0, %c0_i32, %c0_i32_0 : i32, i32, i32
  }
  func.func @transform_9(%arg0: i32) -> (i32, i32, i32) {
    %c0_i32 = arith.constant 0 : i32
    %c0_i32_0 = arith.constant 0 : i32
    %c0_i32_1 = arith.constant 0 : i32
    return %arg0, %c0_i32, %c0_i32_0 : i32, i32, i32
  }
}

</mosaic_0001>

<llo_original>
// kernel: fourier_feature_extractor.1
$region0: #{fourier_feature_extractor.1}
  #allocation0 [shape = 'u32[]', space=smem, size = 0x4, offset = 0x4, fixed_abs, tag = 'smem constant byte address 0x4 - core index']
  #allocation1 [shape = 'u32[144,128]{1,0:T(1,128)}', space=vmem, size = 0x12000, scoped, tag = 'internal scratch']
  %s0 = inlined_call_operand.vmem [shape: f32[1,6,256], index: 0, kind: input, shape index: {}]
  %s1 = inlined_call_operand.vmem [shape: f32[9,256], index: 1, kind: input, shape index: {}]
  %s2 = inlined_call_operand.vmem [shape: f32[8,28], index: 2, kind: input, shape index: {}]
  %s3 = inlined_call_operand.vmem [shape: f32[8,73], index: 3, kind: input, shape index: {}]
  %s4 = inlined_call_operand.vmem [shape: f32[16,512], index: 4, kind: input, shape index: {}]
  %s5 = inlined_call_operand.vmem [shape: bf16[256,512], index: 5, kind: input, shape index: {}]
  %s6 = inlined_call_operand.vmem [shape: bf16[512,256], index: 6, kind: input, shape index: {}]
  %s7 = inlined_call_operand.vmem [shape: f32[1,16,256], index: 7, kind: output, shape index: {0}]
  %s8 = inlined_call_operand.vmem [shape: f32[1,16,512], index: 8, kind: output, shape index: {1}]
  %s9 = inlined_call_operand.vmem [shape: f32[1,16,256], index: 9, kind: output, shape index: {2}]
  %10 = xla_tuple %s7, %s8, %s9
  %s11 = sld [smem:[#allocation0]]
  $region54: #{fourier_feature_extractor.1} parent=0
    _
  %s13 = ssub.s32 1, %s11
  %s14 = scalar_select 0, %s13, %s11
  // Predicated region
  $region2: #{fourier_feature_extractor.1} parent=0 // pred_check
    _
  $region3: #{fourier_feature_extractor.1} parent=0 // pred_check_branch
    %16 = sbr.rel (0) target = $region5
  $region4: #{fourier_feature_extractor.1} parent=0 // pred_region
    _
  $region5: #{fourier_feature_extractor.1} parent=0 // pred_fallthru
    _
  // Predicated region
  $region6: #{fourier_feature_extractor.1} parent=0 // pred_check
    _
  $region7: #{fourier_feature_extractor.1} parent=0 // pred_check_branch
    %18 = sbr.rel (0) target = $region9
  $region8: #{fourier_feature_extractor.1} parent=0 // pred_region
    _
  $region9: #{fourier_feature_extractor.1} parent=0 // pred_fallthru
    _
  // Predicated region
  $region10: #{fourier_feature_extractor.1} parent=0 // pred_check
    _
  $region11: #{fourier_feature_extractor.1} parent=0 // pred_check_branch
    %20 = sbr.rel (0) target = $region13
  $region12: #{fourier_feature_extractor.1} parent=0 // pred_region
    _
  $region13: #{fourier_feature_extractor.1} parent=0 // pred_fallthru
    _
  // Predicated region
  $region14: #{fourier_feature_extractor.1} parent=0 // pred_check
    _
  $region15: #{fourier_feature_extractor.1} parent=0 // pred_check_branch
    %22 = sbr.rel (0) target = $region17
  $region16: #{fourier_feature_extractor.1} parent=0 // pred_region
    _
  $region17: #{fourier_feature_extractor.1} parent=0 // pred_fallthru
    _
  // Predicated region
  $region18: #{fourier_feature_extractor.1} parent=0 // pred_check
    _
  $region19: #{fourier_feature_extractor.1} parent=0 // pred_check_branch
    %24 = sbr.rel (0) target = $region21
  $region20: #{fourier_feature_extractor.1} parent=0 // pred_region
    _
  $region21: #{fourier_feature_extractor.1} parent=0 // pred_fallthru
    _
  // Predicated region
  $region22: #{fourier_feature_extractor.1} parent=0 // pred_check
    _
  $region23: #{fourier_feature_extractor.1} parent=0 // pred_check_branch
    %26 = sbr.rel (0) target = $region25
  $region24: #{fourier_feature_extractor.1} parent=0 // pred_region
    _
  $region25: #{fourier_feature_extractor.1} parent=0 // pred_fallthru
    _
  // Predicated region
  $region26: #{fourier_feature_extractor.1} parent=0 // pred_check
    _
  $region27: #{fourier_feature_extractor.1} parent=0 // pred_check_branch
    %28 = sbr.rel (0) target = $region29
  $region28: #{fourier_feature_extractor.1} parent=0 // pred_region
    _
  $region29: #{fourier_feature_extractor.1} parent=0 // pred_fallthru
    _
  %v29 = vld [vmem:[%s1] sm:$0xff]
  %v30 = vld [vmem:[%s1 + $0x8] sm:$0xff]
  %v31 = vld [vmem:[%s1 + $0x10] sm:$0x1]
  %v32 = vld [vmem:[%s1 + $0x18] sm:$0x1]
  %v33 = vld [vmem:[%s2] sm:$0xff]
  %v34 = vld [vmem:[%s3] sm:$0xff]
  %v35 = vld [vmem:[%s0] sm:$0x7]
  %v36 = vld [vmem:[%s0 + $0x8] sm:$0x7]
  %38 = vrot.lane.b32.xlu0 %v36, 17
  %v39 = vpop.permute.xlu0 %38
  %42 = vrot.lane.b32.xlu0 %v35, 17
  %v43 = vpop.permute.xlu0 %42
  %vm44 = vcmask 138240
  %v45 = vsel %vm44, %v43, %v39
  %v48 = vsel %vm44, %v39, %v43
  %v49 = vlaneseq
  %v50 = vshrl.u32 %v49, 7
  %v51 = vsub.s32 0, %v50
  %v52 = vrot.slane %v29, %v51
  %v53 = vlaneseq
  %v54 = vshrl.u32 %v53, 7
  %v55 = vsub.s32 0, %v54
  %v56 = vrot.slane %v30, %v55
  %v57 = vmul.f32 %v48, %v52
  %v58 = vmul.f32 %v45, %v56
  %59 = vrot.lane.b32.xlu0 %v36, 16
  %v60 = vpop.permute.xlu0 %59
  %62 = vrot.lane.b32.xlu0 %v35, 16
  %v63 = vpop.permute.xlu0 %62
  %vm64 = vcmask 130048
  %v65 = vsel %vm64, %v63, %v60
  %v68 = vsel %vm64, %v60, %v63
  %v69 = vlaneseq
  %v70 = vshrl.u32 %v69, 7
  %v71 = vsub.s32 1, %v70
  %v72 = vrot.slane %v29, %v71
  %v73 = vlaneseq
  %v74 = vshrl.u32 %v73, 7
  %v75 = vsub.s32 1, %v74
  %v76 = vrot.slane %v30, %v75
  %v77 = vmul.f32 %v68, %v72
  %v78 = vmul.f32 %v65, %v76
  %79 = vrot.lane.b32.xlu0 %v36, 15
  %v80 = vpop.permute.xlu0 %79
  %82 = vrot.lane.b32.xlu0 %v35, 15
  %v83 = vpop.permute.xlu0 %82
  %vm84 = vcmask 121856
  %v85 = vsel %vm84, %v83, %v80
  %v88 = vsel %vm84, %v80, %v83
  %v89 = vlaneseq
  %v90 = vshrl.u32 %v89, 7
  %v91 = vsub.s32 2, %v90
  %v92 = vrot.slane %v29, %v91
  %v93 = vlaneseq
  %v94 = vshrl.u32 %v93, 7
  %v95 = vsub.s32 2, %v94
  %v96 = vrot.slane %v30, %v95
  %v97 = vmul.f32 %v88, %v92
  %v98 = vmul.f32 %v85, %v96
  %99 = vrot.lane.b32.xlu0 %v36, 1
  %v100 = vpop.permute.xlu0 %99
  %102 = vrot.lane.b32.xlu0 %v35, 1
  %v103 = vpop.permute.xlu0 %102
  %vm104 = vcmask 7168
  %v105 = vsel %vm104, %v103, %v100
  %v108 = vsel %vm104, %v100, %v103
  %v109 = vlaneseq
  %v110 = vshrl.u32 %v109, 7
  %v111 = vsub.s32 3, %v110
  %v112 = vrot.slane %v29, %v111
  %v113 = vlaneseq
  %v114 = vshrl.u32 %v113, 7
  %v115 = vsub.s32 3, %v114
  %v116 = vrot.slane %v30, %v115
  %v117 = vmul.f32 %v108, %v112
  %v118 = vmul.f32 %v105, %v116
  %v119 = vlaneseq
  %v120 = vshrl.u32 %v119, 7
  %v121 = vsub.s32 4, %v120
  %v122 = vrot.slane %v29, %v121
  %v123 = vlaneseq
  %v124 = vshrl.u32 %v123, 7
  %v125 = vsub.s32 4, %v124
  %v126 = vrot.slane %v30, %v125
  %v127 = vmul.f32 %v35, %v122
  %v128 = vmul.f32 %v36, %v126
  %129 = vrot.lane.b32.xlu0 %v35, 127
  %v130 = vpop.permute.xlu0 %129
  %131 = vrot.lane.b32.xlu0 %v36, 127
  %v132 = vpop.permute.xlu0 %131
  %vm133 = vcmask 1039360
  %v134 = vsel %vm133, %v130, %v132
  %v138 = vsel %vm133, %v132, %v130
  %v139 = vlaneseq
  %v140 = vshrl.u32 %v139, 7
  %v141 = vsub.s32 5, %v140
  %v142 = vrot.slane %v29, %v141
  %v143 = vlaneseq
  %v144 = vshrl.u32 %v143, 7
  %v145 = vsub.s32 5, %v144
  %v146 = vrot.slane %v30, %v145
  %v147 = vmul.f32 %v134, %v142
  %v148 = vmul.f32 %v138, %v146
  %149 = vrot.lane.b32.xlu0 %v35, 113
  %v150 = vpop.permute.xlu0 %149
  %151 = vrot.lane.b32.xlu0 %v36, 113
  %v152 = vpop.permute.xlu0 %151
  %vm153 = vcmask 924672
  %v154 = vsel %vm153, %v150, %v152
  %v158 = vsel %vm153, %v152, %v150
  %v159 = vlaneseq
  %v160 = vshrl.u32 %v159, 7
  %v161 = vsub.s32 6, %v160
  %v162 = vrot.slane %v29, %v161
  %v163 = vlaneseq
  %v164 = vshrl.u32 %v163, 7
  %v165 = vsub.s32 6, %v164
  %v166 = vrot.slane %v30, %v165
  %v167 = vmul.f32 %v154, %v162
  %v168 = vmul.f32 %v158, %v166
  %169 = vrot.lane.b32.xlu0 %v35, 112
  %v170 = vpop.permute.xlu0 %169
  %171 = vrot.lane.b32.xlu0 %v36, 112
  %v172 = vpop.permute.xlu0 %171
  %vm173 = vcmask 916480
  %v174 = vsel %vm173, %v170, %v172
  %v178 = vsel %vm173, %v172, %v170
  %v179 = vlaneseq
  %v180 = vshrl.u32 %v179, 7
  %v181 = vsub.s32 7, %v180
  %v182 = vrot.slane %v29, %v181
  %v183 = vlaneseq
  %v184 = vshrl.u32 %v183, 7
  %v185 = vsub.s32 7, %v184
  %v186 = vrot.slane %v30, %v185
  %v187 = vmul.f32 %v174, %v182
  %v188 = vmul.f32 %v178, %v186
  %189 = vrot.lane.b32.xlu0 %v35, 111
  %v190 = vpop.permute.xlu0 %189
  %191 = vrot.lane.b32.xlu0 %v36, 111
  %v192 = vpop.permute.xlu0 %191
  %vm193 = vcmask 908288
  %v194 = vsel %vm193, %v190, %v192
  %v198 = vsel %vm193, %v192, %v190
  %v199 = vlaneseq
  %v200 = vshrl.u32 %v199, 7
  %v201 = vsub.s32 0, %v200
  %v202 = vrot.slane %v31, %v201
  %v203 = vlaneseq
  %v204 = vshrl.u32 %v203, 7
  %v205 = vsub.s32 0, %v204
  %v206 = vrot.slane %v32, %v205
  %v207 = vmul.f32 %v194, %v202
  %v208 = vmul.f32 %v198, %v206
  %v211 = vrot.slane %v77, 5
  %v212 = vrot.slane %v78, 5
  %v217 = vrot.slane %v97, 2
  %v218 = vrot.slane %v98, 2
  %v223 = vrot.slane %v117, 7
  %v224 = vrot.slane %v118, 7
  %v229 = vrot.slane %v127, 4
  %v230 = vrot.slane %v128, 4
  %v235 = vrot.slane %v147, 1
  %v236 = vrot.slane %v148, 1
  %v241 = vrot.slane %v167, 6
  %v242 = vrot.slane %v168, 6
  %v247 = vrot.slane %v187, 3
  %v248 = vrot.slane %v188, 3
  %vm251 = vcmask 1042432
  %v252 = vsel %vm251, %v57, %v211
  %v253 = vsel %vm251, %v58, %v212
  %vm254 = vcmask 1045504
  %v255 = vsel %vm254, %v252, %v217
  %v256 = vsel %vm254, %v253, %v218
  %vm257 = vcmask 1040384
  %v258 = vsel %vm257, %v217, %v223
  %v259 = vsel %vm257, %v218, %v224
  %vm260 = vcmask 1043456
  %v261 = vsel %vm260, %v258, %v229
  %v262 = vsel %vm260, %v259, %v230
  %vm263 = vcmask 1046528
  %v264 = vsel %vm263, %v261, %v235
  %v265 = vsel %vm263, %v262, %v236
  %vm266 = vcmask 1041408
  %v267 = vsel %vm266, %v235, %v241
  %v268 = vsel %vm266, %v236, %v242
  %vm269 = vcmask 1044480
  %v270 = vsel %vm269, %v267, %v247
  %v271 = vsel %vm269, %v268, %v248
  %v272 = vsel %vm251, %v207, 1.0
  %v273 = vsel %vm251, %v208, 1.0
  %vm274 = vcmask 228352
  %v276 = vsel %vm274, %v33, 0
  %v279 = vsel %vm260, %v272, 0
  %v282 = vsel %vm260, %v273, 0
  %284 = vmatprep.subr.mxu0 %v256
  %285 = vmatpush1.msra.mxu0 %v255
  %286 = vmatprep.subr.mxu0 %v265
  %287 = vmatpush1.msra.mxu0 %v264
  %288 = vmatprep.subr.mxu0 %v271
  %289 = vmatpush1.msra.mxu0 %v270
  %290 = vmatprep.subr.mxu0 %v282
  %291 = vmatpush1.msra.mxu0 %v279
  %292 = vmatprep.subr.mxu0 0.0
  %293 = vmatpush1.msra.mxu0 0.0
  %294 = vmatprep.subr.mxu0 0.0
  %295 = vmatpush1.msra.mxu0 0.0
  %296 = vmatprep.subr.mxu0 0.0
  %297 = vmatpush1.msra.mxu0 0.0
  %298 = vmatprep.subr.mxu0 0.0
  %299 = vmatpush1.msra.mxu0 0.0
  %300 = vmatprep.subr.mxu0 0.0
  %301 = vmatpush1.msra.mxu0 0.0
  %302 = vmatprep.subr.mxu0 0.0
  %303 = vmatpush1.msra.mxu0 0.0
  %304 = vmatprep.subr.mxu0 0.0
  %305 = vmatpush1.msra.mxu0 0.0
  %306 = vmatprep.subr.mxu0 0.0
  %307 = vmatpush1.msra.mxu0 0.0
  %308 = vmatprep.subr.mxu0 0.0
  %309 = vmatpush1.msra.mxu0 0.0
  %310 = vmatprep.subr.mxu0 0.0
  %311 = vmatpush1.msra.mxu0 0.0
  %312 = vmatprep.subr.mxu0 0.0
  %313 = vmatpush1.msra.mxu0 0.0
  %314 = vmatprep.subr.mxu0 0.0
  %315 = vmatpush1.msra.mxu0 0.0
  %316 = vmatprep.subr.mxu0 0.0
  %317 = vmatpush1.msra.mxu0 0.0
  %318 = vmatprep.subr.mxu0 0.0
  %319 = vmatpush1.msra.mxu0 0.0
  %320 = vmatprep.subr.mxu0 0.0
  %321 = vmatpush1.msra.mxu0 0.0
  %322 = vmatprep.subr.mxu0 0.0
  %323 = vmatpush1.msra.mxu0 0.0
  %324 = vmatprep.subr.mxu0 0.0
  %325 = vmatpush1.msra.mxu0 0.0
  %326 = vmatprep.subr.mxu0 0.0
  %327 = vmatpush1.msra.mxu0 0.0
  %328 = vmatprep.subr.mxu0 0.0
  %329 = vmatpush1.msra.mxu0 0.0
  %330 = vmatprep.subr.mxu0 0.0
  %331 = vmatpush1.msra.mxu0 0.0
  %332 = vmatprep.subr.mxu0 0.0
  %333 = vmatpush1.msra.mxu0 0.0
  %334 = vmatprep.subr.mxu0 0.0
  %335 = vmatpush1.msra.mxu0 0.0
  %336 = vmatprep.subr.mxu0 0.0
  %337 = vmatpush1.msra.mxu0 0.0
  %338 = vmatprep.subr.mxu0 0.0
  %339 = vmatpush1.msra.mxu0 0.0
  %340 = vmatprep.subr.mxu0 0.0
  %341 = vmatpush1.msra.mxu0 0.0
  %342 = vmatprep.subr.mxu0 0.0
  %343 = vmatpush1.msra.mxu0 0.0
  %344 = vmatprep.subr.mxu0 0.0
  %345 = vmatpush1.msra.mxu0 0.0
  %346 = vmatprep.subr.mxu0 0.0
  %347 = vmatpush1.msra.mxu0 0.0
  %348 = vmatprep.mubr.f32.mxu0 0.0
  %349 = vmatmul.mubr.f32.gmra.mrb[0].mxu0 %v276
  %v350 = vpop.f32.mrb[0].mxu0
  %v351 = vadd.f32 0.0, %v350
  %v352 = vpop.f32.mrb[0].mxu0
  %v353 = vadd.f32 0.0, %v352
  %354 = vdwg.mxu0
  %v355 = vmax.f32 %v351, 0.0
  %v356 = vmax.f32 %v353, 0.0
  %358 = vrot.lane.b32.xlu0 %v356, 17
  %v359 = vpop.permute.xlu0 %358
  %362 = vrot.lane.b32.xlu0 %v355, 17
  %v363 = vpop.permute.xlu0 %362
  %v364 = vsel %vm44, %v363, %v359
  %v367 = vsel %vm44, %v359, %v363
  %v368 = vmul.f32 %v367, %v52
  %v369 = vmul.f32 %v364, %v56
  %370 = vrot.lane.b32.xlu0 %v356, 16
  %v371 = vpop.permute.xlu0 %370
  %373 = vrot.lane.b32.xlu0 %v355, 16
  %v374 = vpop.permute.xlu0 %373
  %v375 = vsel %vm64, %v374, %v371
  %v378 = vsel %vm64, %v371, %v374
  %v379 = vmul.f32 %v378, %v72
  %v380 = vmul.f32 %v375, %v76
  %381 = vrot.lane.b32.xlu0 %v356, 15
  %v382 = vpop.permute.xlu0 %381
  %384 = vrot.lane.b32.xlu0 %v355, 15
  %v385 = vpop.permute.xlu0 %384
  %v386 = vsel %vm84, %v385, %v382
  %v389 = vsel %vm84, %v382, %v385
  %v390 = vmul.f32 %v389, %v92
  %v391 = vmul.f32 %v386, %v96
  %392 = vrot.lane.b32.xlu0 %v356, 1
  %v393 = vpop.permute.xlu0 %392
  %395 = vrot.lane.b32.xlu0 %v355, 1
  %v396 = vpop.permute.xlu0 %395
  %v397 = vsel %vm104, %v396, %v393
  %v400 = vsel %vm104, %v393, %v396
  %v401 = vmul.f32 %v400, %v112
  %v402 = vmul.f32 %v397, %v116
  %v403 = vmul.f32 %v355, %v122
  %v404 = vmul.f32 %v356, %v126
  %405 = vrot.lane.b32.xlu0 %v355, 127
  %v406 = vpop.permute.xlu0 %405
  %407 = vrot.lane.b32.xlu0 %v356, 127
  %v408 = vpop.permute.xlu0 %407
  %v409 = vsel %vm133, %v406, %v408
  %v413 = vsel %vm133, %v408, %v406
  %v414 = vmul.f32 %v409, %v142
  %v415 = vmul.f32 %v413, %v146
  %416 = vrot.lane.b32.xlu0 %v355, 113
  %v417 = vpop.permute.xlu0 %416
  %418 = vrot.lane.b32.xlu0 %v356, 113
  %v419 = vpop.permute.xlu0 %418
  %v420 = vsel %vm153, %v417, %v419
  %v424 = vsel %vm153, %v419, %v417
  %v425 = vmul.f32 %v420, %v162
  %v426 = vmul.f32 %v424, %v166
  %427 = vrot.lane.b32.xlu0 %v355, 112
  %v428 = vpop.permute.xlu0 %427
  %429 = vrot.lane.b32.xlu0 %v356, 112
  %v430 = vpop.permute.xlu0 %429
  %v431 = vsel %vm173, %v428, %v430
  %v435 = vsel %vm173, %v430, %v428
  %v436 = vmul.f32 %v431, %v182
  %v437 = vmul.f32 %v435, %v186
  %438 = vrot.lane.b32.xlu0 %v355, 111
  %v439 = vpop.permute.xlu0 %438
  %440 = vrot.lane.b32.xlu0 %v356, 111
  %v441 = vpop.permute.xlu0 %440
  %v442 = vsel %vm193, %v439, %v441
  %v446 = vsel %vm193, %v441, %v439
  %v447 = vmul.f32 %v442, %v202
  %v448 = vmul.f32 %v446, %v206
  %vm449 = vcmask 596992
  %v451 = vsel %vm449, %v34, 0
  %v454 = vsel %vm257, 1.0, 0
  %456 = vmatprep.subr.mxu0 %v369
  %457 = vmatpush1.msra.mxu0 %v368
  %458 = vmatprep.subr.mxu0 %v380
  %459 = vmatpush1.msra.mxu0 %v379
  %460 = vmatprep.subr.mxu0 %v391
  %461 = vmatpush1.msra.mxu0 %v390
  %462 = vmatprep.subr.mxu0 %v402
  %463 = vmatpush1.msra.mxu0 %v401
  %464 = vmatprep.subr.mxu0 %v404
  %465 = vmatpush1.msra.mxu0 %v403
  %466 = vmatprep.subr.mxu0 %v415
  %467 = vmatpush1.msra.mxu0 %v414
  %468 = vmatprep.subr.mxu0 %v426
  %469 = vmatpush1.msra.mxu0 %v425
  %470 = vmatprep.subr.mxu0 %v437
  %471 = vmatpush1.msra.mxu0 %v436
  %472 = vmatprep.subr.mxu0 %v448
  %473 = vmatpush1.msra.mxu0 %v447
  %474 = vmatprep.subr.mxu0 %v454
  %475 = vmatpush1.msra.mxu0 %v454
  %476 = vmatprep.subr.mxu0 0.0
  %477 = vmatpush1.msra.mxu0 0.0
  %478 = vmatprep.subr.mxu0 0.0
  %479 = vmatpush1.msra.mxu0 0.0
  %480 = vmatprep.subr.mxu0 0.0
  %481 = vmatpush1.msra.mxu0 0.0
  %482 = vmatprep.subr.mxu0 0.0
  %483 = vmatpush1.msra.mxu0 0.0
  %484 = vmatprep.subr.mxu0 0.0
  %485 = vmatpush1.msra.mxu0 0.0
  %486 = vmatprep.subr.mxu0 0.0
  %487 = vmatpush1.msra.mxu0 0.0
  %488 = vmatprep.subr.mxu0 0.0
  %489 = vmatpush1.msra.mxu0 0.0
  %490 = vmatprep.subr.mxu0 0.0
  %491 = vmatpush1.msra.mxu0 0.0
  %492 = vmatprep.subr.mxu0 0.0
  %493 = vmatpush1.msra.mxu0 0.0
  %494 = vmatprep.subr.mxu0 0.0
  %495 = vmatpush1.msra.mxu0 0.0
  %496 = vmatprep.subr.mxu0 0.0
  %497 = vmatpush1.msra.mxu0 0.0
  %498 = vmatprep.subr.mxu0 0.0
  %499 = vmatpush1.msra.mxu0 0.0
  %500 = vmatprep.subr.mxu0 0.0
  %501 = vmatpush1.msra.mxu0 0.0
  %502 = vmatprep.subr.mxu0 0.0
  %503 = vmatpush1.msra.mxu0 0.0
  %504 = vmatprep.subr.mxu0 0.0
  %505 = vmatpush1.msra.mxu0 0.0
  %506 = vmatprep.subr.mxu0 0.0
  %507 = vmatpush1.msra.mxu0 0.0
  %508 = vmatprep.subr.mxu0 0.0
  %509 = vmatpush1.msra.mxu0 0.0
  %510 = vmatprep.subr.mxu0 0.0
  %511 = vmatpush1.msra.mxu0 0.0
  %512 = vmatprep.subr.mxu0 0.0
  %513 = vmatpush1.msra.mxu0 0.0
  %514 = vmatprep.subr.mxu0 0.0
  %515 = vmatpush1.msra.mxu0 0.0
  %516 = vmatprep.subr.mxu0 0.0
  %517 = vmatpush1.msra.mxu0 0.0
  %518 = vmatprep.subr.mxu0 0.0
  %519 = vmatpush1.msra.mxu0 0.0
  %520 = vmatprep.mubr.f32.mxu0 0.0
  %521 = vmatmul.mubr.f32.gmra.mrb[0].mxu0 %v451
  %v522 = vpop.f32.mrb[0].mxu0
  %v523 = vadd.f32 0.0, %v522
  %v524 = vpop.f32.mrb[0].mxu0
  %v525 = vadd.f32 0.0, %v524
  %526 = vdwg.mxu0
  %v527 = vmax.f32 %v523, 0.0
  %v528 = vmax.f32 %v525, 0.0
  %v529 = vld [vmem:[%s0] sm:$0x38]
  %v530 = vld [vmem:[%s0 + $0x8] sm:$0x38]
  %532 = vrot.lane.b32.xlu0 %v530, 17
  %v533 = vpop.permute.xlu0 %532
  %536 = vrot.lane.b32.xlu0 %v529, 17
  %v537 = vpop.permute.xlu0 %536
  %v538 = vsel %vm44, %v537, %v533
  %v541 = vsel %vm44, %v533, %v537
  %v542 = vmul.f32 %v541, %v52
  %v543 = vmul.f32 %v538, %v56
  %544 = vrot.lane.b32.xlu0 %v530, 16
  %v545 = vpop.permute.xlu0 %544
  %547 = vrot.lane.b32.xlu0 %v529, 16
  %v548 = vpop.permute.xlu0 %547
  %v549 = vsel %vm64, %v548, %v545
  %v552 = vsel %vm64, %v545, %v548
  %v553 = vmul.f32 %v552, %v72
  %v554 = vmul.f32 %v549, %v76
  %555 = vrot.lane.b32.xlu0 %v530, 15
  %v556 = vpop.permute.xlu0 %555
  %558 = vrot.lane.b32.xlu0 %v529, 15
  %v559 = vpop.permute.xlu0 %558
  %v560 = vsel %vm84, %v559, %v556
  %v563 = vsel %vm84, %v556, %v559
  %v564 = vmul.f32 %v563, %v92
  %v565 = vmul.f32 %v560, %v96
  %566 = vrot.lane.b32.xlu0 %v530, 1
  %v567 = vpop.permute.xlu0 %566
  %569 = vrot.lane.b32.xlu0 %v529, 1
  %v570 = vpop.permute.xlu0 %569
  %v571 = vsel %vm104, %v570, %v567
  %v574 = vsel %vm104, %v567, %v570
  %v575 = vmul.f32 %v574, %v112
  %v576 = vmul.f32 %v571, %v116
  %v577 = vmul.f32 %v529, %v122
  %v578 = vmul.f32 %v530, %v126
  %579 = vrot.lane.b32.xlu0 %v529, 127
  %v580 = vpop.permute.xlu0 %579
  %581 = vrot.lane.b32.xlu0 %v530, 127
  %v582 = vpop.permute.xlu0 %581
  %v583 = vsel %vm133, %v580, %v582
  %v587 = vsel %vm133, %v582, %v580
  %v588 = vmul.f32 %v583, %v142
  %v589 = vmul.f32 %v587, %v146
  %590 = vrot.lane.b32.xlu0 %v529, 113
  %v591 = vpop.permute.xlu0 %590
  %592 = vrot.lane.b32.xlu0 %v530, 113
  %v593 = vpop.permute.xlu0 %592
  %v594 = vsel %vm153, %v591, %v593
  %v598 = vsel %vm153, %v593, %v591
  %v599 = vmul.f32 %v594, %v162
  %v600 = vmul.f32 %v598, %v166
  %601 = vrot.lane.b32.xlu0 %v529, 112
  %v602 = vpop.permute.xlu0 %601
  %603 = vrot.lane.b32.xlu0 %v530, 112
  %v604 = vpop.permute.xlu0 %603
  %v605 = vsel %vm173, %v602, %v604
  %v609 = vsel %vm173, %v604, %v602
  %v610 = vmul.f32 %v605, %v182
  %v611 = vmul.f32 %v609, %v186
  %612 = vrot.lane.b32.xlu0 %v529, 111
  %v613 = vpop.permute.xlu0 %612
  %614 = vrot.lane.b32.xlu0 %v530, 111
  %v615 = vpop.permute.xlu0 %614
  %v616 = vsel %vm193, %v613, %v615
  %v620 = vsel %vm193, %v615, %v613
  %v621 = vmul.f32 %v616, %v202
  %v622 = vmul.f32 %v620, %v206
  %v625 = vrot.slane %v542, 3
  %v626 = vrot.slane %v543, 3
  %v631 = vrot.slane %v564, 5
  %v632 = vrot.slane %v565, 5
  %v637 = vrot.slane %v575, 2
  %v638 = vrot.slane %v576, 2
  %v643 = vrot.slane %v577, 7
  %v644 = vrot.slane %v578, 7
  %v649 = vrot.slane %v588, 4
  %v650 = vrot.slane %v589, 4
  %v655 = vrot.slane %v599, 1
  %v656 = vrot.slane %v600, 1
  %v661 = vrot.slane %v610, 6
  %v662 = vrot.slane %v611, 6
  %v667 = vrot.slane %v621, 3
  %v668 = vrot.slane %v622, 3
  %v671 = vsel %vm251, %v625, %v553
  %v672 = vsel %vm251, %v626, %v554
  %v673 = vsel %vm254, %v671, %v631
  %v674 = vsel %vm254, %v672, %v632
  %v675 = vsel %vm257, %v631, %v637
  %v676 = vsel %vm257, %v632, %v638
  %v677 = vsel %vm260, %v675, %v643
  %v678 = vsel %vm260, %v676, %v644
  %v679 = vsel %vm263, %v677, %v649
  %v680 = vsel %vm263, %v678, %v650
  %v681 = vsel %vm266, %v649, %v655
  %v682 = vsel %vm266, %v650, %v656
  %v683 = vsel %vm269, %v681, %v661
  %v684 = vsel %vm269, %v682, %v662
  %v685 = vsel %vm251, %v667, 1.0
  %v686 = vsel %vm251, %v668, 1.0
  %v688 = vsel %vm260, %v685, 0
  %v691 = vsel %vm260, %v686, 0
  %693 = vmatprep.subr.mxu0 %v674
  %694 = vmatpush1.msra.mxu0 %v673
  %695 = vmatprep.subr.mxu0 %v680
  %696 = vmatpush1.msra.mxu0 %v679
  %697 = vmatprep.subr.mxu0 %v684
  %698 = vmatpush1.msra.mxu0 %v683
  %699 = vmatprep.subr.mxu0 %v691
  %700 = vmatpush1.msra.mxu0 %v688
  %701 = vmatprep.subr.mxu0 0.0
  %702 = vmatpush1.msra.mxu0 0.0
  %703 = vmatprep.subr.mxu0 0.0
  %704 = vmatpush1.msra.mxu0 0.0
  %705 = vmatprep.subr.mxu0 0.0
  %706 = vmatpush1.msra.mxu0 0.0
  %707 = vmatprep.subr.mxu0 0.0
  %708 = vmatpush1.msra.mxu0 0.0
  %709 = vmatprep.subr.mxu0 0.0
  %710 = vmatpush1.msra.mxu0 0.0
  %711 = vmatprep.subr.mxu0 0.0
  %712 = vmatpush1.msra.mxu0 0.0
  %713 = vmatprep.subr.mxu0 0.0
  %714 = vmatpush1.msra.mxu0 0.0
  %715 = vmatprep.subr.mxu0 0.0
  %716 = vmatpush1.msra.mxu0 0.0
  %717 = vmatprep.subr.mxu0 0.0
  %718 = vmatpush1.msra.mxu0 0.0
  %719 = vmatprep.subr.mxu0 0.0
  %720 = vmatpush1.msra.mxu0 0.0
  %721 = vmatprep.subr.mxu0 0.0
  %722 = vmatpush1.msra.mxu0 0.0
  %723 = vmatprep.subr.mxu0 0.0
  %724 = vmatpush1.msra.mxu0 0.0
  %725 = vmatprep.subr.mxu0 0.0
  %726 = vmatpush1.msra.mxu0 0.0
  %727 = vmatprep.subr.mxu0 0.0
  %728 = vmatpush1.msra.mxu0 0.0
  %729 = vmatprep.subr.mxu0 0.0
  %730 = vmatpush1.msra.mxu0 0.0
  %731 = vmatprep.subr.mxu0 0.0
  %732 = vmatpush1.msra.mxu0 0.0
  %733 = vmatprep.subr.mxu0 0.0
  %734 = vmatpush1.msra.mxu0 0.0
  %735 = vmatprep.subr.mxu0 0.0
  %736 = vmatpush1.msra.mxu0 0.0
  %737 = vmatprep.subr.mxu0 0.0
  %738 = vmatpush1.msra.mxu0 0.0
  %739 = vmatprep.subr.mxu0 0.0
  %740 = vmatpush1.msra.mxu0 0.0
  %741 = vmatprep.subr.mxu0 0.0
  %742 = vmatpush1.msra.mxu0 0.0
  %743 = vmatprep.subr.mxu0 0.0
  %744 = vmatpush1.msra.mxu0 0.0
  %745 = vmatprep.subr.mxu0 0.0
  %746 = vmatpush1.msra.mxu0 0.0
  %747 = vmatprep.subr.mxu0 0.0
  %748 = vmatpush1.msra.mxu0 0.0
  %749 = vmatprep.subr.mxu0 0.0
  %750 = vmatpush1.msra.mxu0 0.0
  %751 = vmatprep.subr.mxu0 0.0
  %752 = vmatpush1.msra.mxu0 0.0
  %753 = vmatprep.subr.mxu0 0.0
  %754 = vmatpush1.msra.mxu0 0.0
  %755 = vmatprep.subr.mxu0 0.0
  %756 = vmatpush1.msra.mxu0 0.0
  %757 = vmatprep.mubr.f32.mxu0 0.0
  %758 = vmatmul.mubr.f32.gmra.mrb[0].mxu0 %v276
  %v759 = vpop.f32.mrb[0].mxu0
  %v760 = vadd.f32 0.0, %v759
  %v761 = vpop.f32.mrb[0].mxu0
  %v762 = vadd.f32 0.0, %v761
  %763 = vdwg.mxu0
  %v764 = vmax.f32 %v760, 0.0
  %v765 = vmax.f32 %v762, 0.0
  %767 = vrot.lane.b32.xlu0 %v765, 17
  %v768 = vpop.permute.xlu0 %767
  %771 = vrot.lane.b32.xlu0 %v764, 17
  %v772 = vpop.permute.xlu0 %771
  %v773 = vsel %vm44, %v772, %v768
  %v776 = vsel %vm44, %v768, %v772
  %v777 = vmul.f32 %v776, %v52
  %v778 = vmul.f32 %v773, %v56
  %779 = vrot.lane.b32.xlu0 %v765, 16
  %v780 = vpop.permute.xlu0 %779
  %782 = vrot.lane.b32.xlu0 %v764, 16
  %v783 = vpop.permute.xlu0 %782
  %v784 = vsel %vm64, %v783, %v780
  %v787 = vsel %vm64, %v780, %v783
  %v788 = vmul.f32 %v787, %v72
  %v789 = vmul.f32 %v784, %v76
  %790 = vrot.lane.b32.xlu0 %v765, 15
  %v791 = vpop.permute.xlu0 %790
  %793 = vrot.lane.b32.xlu0 %v764, 15
  %v794 = vpop.permute.xlu0 %793
  %v795 = vsel %vm84, %v794, %v791
  %v798 = vsel %vm84, %v791, %v794
  %v799 = vmul.f32 %v798, %v92
  %v800 = vmul.f32 %v795, %v96
  %801 = vrot.lane.b32.xlu0 %v765, 1
  %v802 = vpop.permute.xlu0 %801
  %804 = vrot.lane.b32.xlu0 %v764, 1
  %v805 = vpop.permute.xlu0 %804
  %v806 = vsel %vm104, %v805, %v802
  %v809 = vsel %vm104, %v802, %v805
  %v810 = vmul.f32 %v809, %v112
  %v811 = vmul.f32 %v806, %v116
  %v812 = vmul.f32 %v764, %v122
  %v813 = vmul.f32 %v765, %v126
  %814 = vrot.lane.b32.xlu0 %v764, 127
  %v815 = vpop.permute.xlu0 %814
  %816 = vrot.lane.b32.xlu0 %v765, 127
  %v817 = vpop.permute.xlu0 %816
  %v818 = vsel %vm133, %v815, %v817
  %v822 = vsel %vm133, %v817, %v815
  %v823 = vmul.f32 %v818, %v142
  %v824 = vmul.f32 %v822, %v146
  %825 = vrot.lane.b32.xlu0 %v764, 113
  %v826 = vpop.permute.xlu0 %825
  %827 = vrot.lane.b32.xlu0 %v765, 113
  %v828 = vpop.permute.xlu0 %827
  %v829 = vsel %vm153, %v826, %v828
  %v833 = vsel %vm153, %v828, %v826
  %v834 = vmul.f32 %v829, %v162
  %v835 = vmul.f32 %v833, %v166
  %836 = vrot.lane.b32.xlu0 %v764, 112
  %v837 = vpop.permute.xlu0 %836
  %838 = vrot.lane.b32.xlu0 %v765, 112
  %v839 = vpop.permute.xlu0 %838
  %v840 = vsel %vm173, %v837, %v839
  %v844 = vsel %vm173, %v839, %v837
  %v845 = vmul.f32 %v840, %v182
  %v846 = vmul.f32 %v844, %v186
  %847 = vrot.lane.b32.xlu0 %v764, 111
  %v848 = vpop.permute.xlu0 %847
  %849 = vrot.lane.b32.xlu0 %v765, 111
  %v850 = vpop.permute.xlu0 %849
  %v851 = vsel %vm193, %v848, %v850
  %v855 = vsel %vm193, %v850, %v848
  %v856 = vmul.f32 %v851, %v202
  %v857 = vmul.f32 %v855, %v206
  %858 = vmatprep.subr.mxu0 %v778
  %859 = vmatpush1.msra.mxu0 %v777
  %860 = vmatprep.subr.mxu0 %v789
  %861 = vmatpush1.msra.mxu0 %v788
  %862 = vmatprep.subr.mxu0 %v800
  %863 = vmatpush1.msra.mxu0 %v799
  %864 = vmatprep.subr.mxu0 %v811
  %865 = vmatpush1.msra.mxu0 %v810
  %866 = vmatprep.subr.mxu0 %v813
  %867 = vmatpush1.msra.mxu0 %v812
  %868 = vmatprep.subr.mxu0 %v824
  %869 = vmatpush1.msra.mxu0 %v823
  %870 = vmatprep.subr.mxu0 %v835
  %871 = vmatpush1.msra.mxu0 %v834
  %872 = vmatprep.subr.mxu0 %v846
  %873 = vmatpush1.msra.mxu0 %v845
  %874 = vmatprep.subr.mxu0 %v857
  %875 = vmatpush1.msra.mxu0 %v856
  %876 = vmatprep.subr.mxu0 %v454
  %877 = vmatpush1.msra.mxu0 %v454
  %878 = vmatprep.subr.mxu0 0.0
  %879 = vmatpush1.msra.mxu0 0.0
  %880 = vmatprep.subr.mxu0 0.0
  %881 = vmatpush1.msra.mxu0 0.0
  %882 = vmatprep.subr.mxu0 0.0
  %883 = vmatpush1.msra.mxu0 0.0
  %884 = vmatprep.subr.mxu0 0.0
  %885 = vmatpush1.msra.mxu0 0.0
  %886 = vmatprep.subr.mxu0 0.0
  %887 = vmatpush1.msra.mxu0 0.0
  %888 = vmatprep.subr.mxu0 0.0
  %889 = vmatpush1.msra.mxu0 0.0
  %890 = vmatprep.subr.mxu0 0.0
  %891 = vmatpush1.msra.mxu0 0.0
  %892 = vmatprep.subr.mxu0 0.0
  %893 = vmatpush1.msra.mxu0 0.0
  %894 = vmatprep.subr.mxu0 0.0
  %895 = vmatpush1.msra.mxu0 0.0
  %896 = vmatprep.subr.mxu0 0.0
  %897 = vmatpush1.msra.mxu0 0.0
  %898 = vmatprep.subr.mxu0 0.0
  %899 = vmatpush1.msra.mxu0 0.0
  %900 = vmatprep.subr.mxu0 0.0
  %901 = vmatpush1.msra.mxu0 0.0
  %902 = vmatprep.subr.mxu0 0.0
  %903 = vmatpush1.msra.mxu0 0.0
  %904 = vmatprep.subr.mxu0 0.0
  %905 = vmatpush1.msra.mxu0 0.0
  %906 = vmatprep.subr.mxu0 0.0
  %907 = vmatpush1.msra.mxu0 0.0
  %908 = vmatprep.subr.mxu0 0.0
  %909 = vmatpush1.msra.mxu0 0.0
  %910 = vmatprep.subr.mxu0 0.0
  %911 = vmatpush1.msra.mxu0 0.0
  %912 = vmatprep.subr.mxu0 0.0
  %913 = vmatpush1.msra.mxu0 0.0
  %914 = vmatprep.subr.mxu0 0.0
  %915 = vmatpush1.msra.mxu0 0.0
  %916 = vmatprep.subr.mxu0 0.0
  %917 = vmatpush1.msra.mxu0 0.0
  %918 = vmatprep.subr.mxu0 0.0
  %919 = vmatpush1.msra.mxu0 0.0
  %920 = vmatprep.subr.mxu0 0.0
  %921 = vmatpush1.msra.mxu0 0.0
  %922 = vmatprep.mubr.f32.mxu0 0.0
  %923 = vmatmul.mubr.f32.gmra.mrb[0].mxu0 %v451
  %v924 = vpop.f32.mrb[0].mxu0
  %v925 = vadd.f32 0.0, %v924
  %v926 = vpop.f32.mrb[0].mxu0
  %v927 = vadd.f32 0.0, %v926
  %928 = vdwg.mxu0
  %v929 = vmax.f32 %v925, 0.0
  %v930 = vmax.f32 %v927, 0.0
  %931 = vst [vmem:[%s7] sm:$0xff] %v527
  %932 = vst [vmem:[%s7 + $0x8] sm:$0xff] %v528
  %933 = vst [vmem:[%s7 + $0x10] sm:$0xff] %v929
  %934 = vst [vmem:[%s7 + $0x18] sm:$0xff] %v930
  %v935 = vpack.c.bf16 %v929, %v527
  %v936 = vpack.c.bf16 %v930, %v528
  %v937 = vld [vmem:[%s5] sm:$0xff]
  %v938 = vld [vmem:[%s5 + $0x8] sm:$0xff]
  %v939 = vld [vmem:[%s5 + $0x10] sm:$0xff]
  %v940 = vld [vmem:[%s5 + $0x18] sm:$0xff]
  %v941 = vld [vmem:[%s5 + $0x20] sm:$0xff]
  %v942 = vld [vmem:[%s5 + $0x28] sm:$0xff]
  %v943 = vld [vmem:[%s5 + $0x30] sm:$0xff]
  %v944 = vld [vmem:[%s5 + $0x38] sm:$0xff]
  %v945 = vld [vmem:[%s5 + $0x40] sm:$0xff]
  %v946 = vld [vmem:[%s5 + $0x48] sm:$0xff]
  %v947 = vld [vmem:[%s5 + $0x50] sm:$0xff]
  %v948 = vld [vmem:[%s5 + $0x58] sm:$0xff]
  %v949 = vld [vmem:[%s5 + $0x60] sm:$0xff]
  %v950 = vld [vmem:[%s5 + $0x68] sm:$0xff]
  %v951 = vld [vmem:[%s5 + $0x70] sm:$0xff]
  %v952 = vld [vmem:[%s5 + $0x78] sm:$0xff]
  %v953 = vld [vmem:[%s5 + $0x80] sm:$0xff]
  %v954 = vld [vmem:[%s5 + $0x88] sm:$0xff]
  %v955 = vld [vmem:[%s5 + $0x90] sm:$0xff]
  %v956 = vld [vmem:[%s5 + $0x98] sm:$0xff]
  %v957 = vld [vmem:[%s5 + $0xa0] sm:$0xff]
  %v958 = vld [vmem:[%s5 + $0xa8] sm:$0xff]
  %v959 = vld [vmem:[%s5 + $0xb0] sm:$0xff]
  %v960 = vld [vmem:[%s5 + $0xb8] sm:$0xff]
  %v961 = vld [vmem:[%s5 + $0xc0] sm:$0xff]
  %v962 = vld [vmem:[%s5 + $0xc8] sm:$0xff]
  %v963 = vld [vmem:[%s5 + $0xd0] sm:$0xff]
  %v964 = vld [vmem:[%s5 + $0xd8] sm:$0xff]
  %v965 = vld [vmem:[%s5 + $0xe0] sm:$0xff]
  %v966 = vld [vmem:[%s5 + $0xe8] sm:$0xff]
  %v967 = vld [vmem:[%s5 + $0xf0] sm:$0xff]
  %v968 = vld [vmem:[%s5 + $0xf8] sm:$0xff]
  %v969 = vld [vmem:[%s5 + $0x100] sm:$0xff]
  %v970 = vld [vmem:[%s5 + $0x108] sm:$0xff]
  %v971 = vld [vmem:[%s5 + $0x110] sm:$0xff]
  %v972 = vld [vmem:[%s5 + $0x118] sm:$0xff]
  %v973 = vld [vmem:[%s5 + $0x120] sm:$0xff]
  %v974 = vld [vmem:[%s5 + $0x128] sm:$0xff]
  %v975 = vld [vmem:[%s5 + $0x130] sm:$0xff]
  %v976 = vld [vmem:[%s5 + $0x138] sm:$0xff]
  %v977 = vld [vmem:[%s5 + $0x140] sm:$0xff]
  %v978 = vld [vmem:[%s5 + $0x148] sm:$0xff]
  %v979 = vld [vmem:[%s5 + $0x150] sm:$0xff]
  %v980 = vld [vmem:[%s5 + $0x158] sm:$0xff]
  %v981 = vld [vmem:[%s5 + $0x160] sm:$0xff]
  %v982 = vld [vmem:[%s5 + $0x168] sm:$0xff]
  %v983 = vld [vmem:[%s5 + $0x170] sm:$0xff]
  %v984 = vld [vmem:[%s5 + $0x178] sm:$0xff]
  %v985 = vld [vmem:[%s5 + $0x180] sm:$0xff]
  %v986 = vld [vmem:[%s5 + $0x188] sm:$0xff]
  %v987 = vld [vmem:[%s5 + $0x190] sm:$0xff]
  %v988 = vld [vmem:[%s5 + $0x198] sm:$0xff]
  %v989 = vld [vmem:[%s5 + $0x1a0] sm:$0xff]
  %v990 = vld [vmem:[%s5 + $0x1a8] sm:$0xff]
  %v991 = vld [vmem:[%s5 + $0x1b0] sm:$0xff]
  %v992 = vld [vmem:[%s5 + $0x1b8] sm:$0xff]
  %v993 = vld [vmem:[%s5 + $0x1c0] sm:$0xff]
  %v994 = vld [vmem:[%s5 + $0x1c8] sm:$0xff]
  %v995 = vld [vmem:[%s5 + $0x1d0] sm:$0xff]
  %v996 = vld [vmem:[%s5 + $0x1d8] sm:$0xff]
  %v997 = vld [vmem:[%s5 + $0x1e0] sm:$0xff]
  %v998 = vld [vmem:[%s5 + $0x1e8] sm:$0xff]
  %v999 = vld [vmem:[%s5 + $0x1f0] sm:$0xff]
  %v1000 = vld [vmem:[%s5 + $0x1f8] sm:$0xff]
  %v1065 = vunpack.c.l.b16 %v937
  %v1066 = vunpack.c.h.b16 %v937
  %v1067 = vunpack.c.l.b16 %v938
  %v1068 = vunpack.c.h.b16 %v938
  %v1069 = vunpack.c.l.b16 %v939
  %v1070 = vunpack.c.h.b16 %v939
  %v1071 = vunpack.c.l.b16 %v940
  %v1072 = vunpack.c.h.b16 %v940
  %v1073 = vunpack.c.l.b16 %v941
  %v1074 = vunpack.c.h.b16 %v941
  %v1075 = vunpack.c.l.b16 %v942
  %v1076 = vunpack.c.h.b16 %v942
  %v1077 = vunpack.c.l.b16 %v943
  %v1078 = vunpack.c.h.b16 %v943
  %v1079 = vunpack.c.l.b16 %v944
  %v1080 = vunpack.c.h.b16 %v944
  %v1081 = vunpack.c.l.b16 %v945
  %v1082 = vunpack.c.h.b16 %v945
  %v1083 = vunpack.c.l.b16 %v946
  %v1084 = vunpack.c.h.b16 %v946
  %v1085 = vunpack.c.l.b16 %v947
  %v1086 = vunpack.c.h.b16 %v947
  %v1087 = vunpack.c.l.b16 %v948
  %v1088 = vunpack.c.h.b16 %v948
  %v1089 = vunpack.c.l.b16 %v949
  %v1090 = vunpack.c.h.b16 %v949
  %v1091 = vunpack.c.l.b16 %v950
  %v1092 = vunpack.c.h.b16 %v950
  %v1093 = vunpack.c.l.b16 %v951
  %v1094 = vunpack.c.h.b16 %v951
  %v1095 = vunpack.c.l.b16 %v952
  %v1096 = vunpack.c.h.b16 %v952
  %v1097 = vunpack.c.l.b16 %v953
  %v1098 = vunpack.c.h.b16 %v953
  %v1099 = vunpack.c.l.b16 %v954
  %v1100 = vunpack.c.h.b16 %v954
  %v1101 = vunpack.c.l.b16 %v955
  %v1102 = vunpack.c.h.b16 %v955
  %v1103 = vunpack.c.l.b16 %v956
  %v1104 = vunpack.c.h.b16 %v956
  %v1105 = vunpack.c.l.b16 %v957
  %v1106 = vunpack.c.h.b16 %v957
  %v1107 = vunpack.c.l.b16 %v958
  %v1108 = vunpack.c.h.b16 %v958
  %v1109 = vunpack.c.l.b16 %v959
  %v1110 = vunpack.c.h.b16 %v959
  %v1111 = vunpack.c.l.b16 %v960
  %v1112 = vunpack.c.h.b16 %v960
  %v1113 = vunpack.c.l.b16 %v961
  %v1114 = vunpack.c.h.b16 %v961
  %v1115 = vunpack.c.l.b16 %v962
  %v1116 = vunpack.c.h.b16 %v962
  %v1117 = vunpack.c.l.b16 %v963
  %v1118 = vunpack.c.h.b16 %v963
  %v1119 = vunpack.c.l.b16 %v964
  %v1120 = vunpack.c.h.b16 %v964
  %v1121 = vunpack.c.l.b16 %v965
  %v1122 = vunpack.c.h.b16 %v965
  %v1123 = vunpack.c.l.b16 %v966
  %v1124 = vunpack.c.h.b16 %v966
  %v1125 = vunpack.c.l.b16 %v967
  %v1126 = vunpack.c.h.b16 %v967
  %v1127 = vunpack.c.l.b16 %v968
  %v1128 = vunpack.c.h.b16 %v968
  %v1129 = vunpack.c.l.b16 %v969
  %v1130 = vunpack.c.h.b16 %v969
  %v1131 = vunpack.c.l.b16 %v970
  %v1132 = vunpack.c.h.b16 %v970
  %v1133 = vunpack.c.l.b16 %v971
  %v1134 = vunpack.c.h.b16 %v971
  %v1135 = vunpack.c.l.b16 %v972
  %v1136 = vunpack.c.h.b16 %v972
  %v1137 = vunpack.c.l.b16 %v973
  %v1138 = vunpack.c.h.b16 %v973
  %v1139 = vunpack.c.l.b16 %v974
  %v1140 = vunpack.c.h.b16 %v974
  %v1141 = vunpack.c.l.b16 %v975
  %v1142 = vunpack.c.h.b16 %v975
  %v1143 = vunpack.c.l.b16 %v976
  %v1144 = vunpack.c.h.b16 %v976
  %v1145 = vunpack.c.l.b16 %v977
  %v1146 = vunpack.c.h.b16 %v977
  %v1147 = vunpack.c.l.b16 %v978
  %v1148 = vunpack.c.h.b16 %v978
  %v1149 = vunpack.c.l.b16 %v979
  %v1150 = vunpack.c.h.b16 %v979
  %v1151 = vunpack.c.l.b16 %v980
  %v1152 = vunpack.c.h.b16 %v980
  %v1153 = vunpack.c.l.b16 %v981
  %v1154 = vunpack.c.h.b16 %v981
  %v1155 = vunpack.c.l.b16 %v982
  %v1156 = vunpack.c.h.b16 %v982
  %v1157 = vunpack.c.l.b16 %v983
  %v1158 = vunpack.c.h.b16 %v983
  %v1159 = vunpack.c.l.b16 %v984
  %v1160 = vunpack.c.h.b16 %v984
  %v1161 = vunpack.c.l.b16 %v985
  %v1162 = vunpack.c.h.b16 %v985
  %v1163 = vunpack.c.l.b16 %v986
  %v1164 = vunpack.c.h.b16 %v986
  %v1165 = vunpack.c.l.b16 %v987
  %v1166 = vunpack.c.h.b16 %v987
  %v1167 = vunpack.c.l.b16 %v988
  %v1168 = vunpack.c.h.b16 %v988
  %v1169 = vunpack.c.l.b16 %v989
  %v1170 = vunpack.c.h.b16 %v989
  %v1171 = vunpack.c.l.b16 %v990
  %v1172 = vunpack.c.h.b16 %v990
  %v1173 = vunpack.c.l.b16 %v991
  %v1174 = vunpack.c.h.b16 %v991
  %v1175 = vunpack.c.l.b16 %v992
  %v1176 = vunpack.c.h.b16 %v992
  %v1177 = vunpack.c.l.b16 %v993
  %v1178 = vunpack.c.h.b16 %v993
  %v1179 = vunpack.c.l.b16 %v994
  %v1180 = vunpack.c.h.b16 %v994
  %v1181 = vunpack.c.l.b16 %v995
  %v1182 = vunpack.c.h.b16 %v995
  %v1183 = vunpack.c.l.b16 %v996
  %v1184 = vunpack.c.h.b16 %v996
  %v1185 = vunpack.c.l.b16 %v997
  %v1186 = vunpack.c.h.b16 %v997
  %v1187 = vunpack.c.l.b16 %v998
  %v1188 = vunpack.c.h.b16 %v998
  %v1189 = vunpack.c.l.b16 %v999
  %v1190 = vunpack.c.h.b16 %v999
  %v1191 = vunpack.c.l.b16 %v1000
  %v1192 = vunpack.c.h.b16 %v1000
  %v1193 = vpack.c.b16 %v1069, %v1065
  %v1194 = vpack.c.b16 %v1070, %v1066
  %v1195 = vpack.c.b16 %v1071, %v1067
  %v1196 = vpack.c.b16 %v1072, %v1068
  %v1197 = vpack.c.b16 %v1077, %v1073
  %v1198 = vpack.c.b16 %v1078, %v1074
  %v1199 = vpack.c.b16 %v1079, %v1075
  %v1200 = vpack.c.b16 %v1080, %v1076
  %v1201 = vpack.c.b16 %v1085, %v1081
  %v1202 = vpack.c.b16 %v1086, %v1082
  %v1203 = vpack.c.b16 %v1087, %v1083
  %v1204 = vpack.c.b16 %v1088, %v1084
  %v1205 = vpack.c.b16 %v1093, %v1089
  %v1206 = vpack.c.b16 %v1094, %v1090
  %v1207 = vpack.c.b16 %v1095, %v1091
  %v1208 = vpack.c.b16 %v1096, %v1092
  %v1209 = vpack.c.b16 %v1101, %v1097
  %v1210 = vpack.c.b16 %v1102, %v1098
  %v1211 = vpack.c.b16 %v1103, %v1099
  %v1212 = vpack.c.b16 %v1104, %v1100
  %v1213 = vpack.c.b16 %v1109, %v1105
  %v1214 = vpack.c.b16 %v1110, %v1106
  %v1215 = vpack.c.b16 %v1111, %v1107
  %v1216 = vpack.c.b16 %v1112, %v1108
  %v1217 = vpack.c.b16 %v1117, %v1113
  %v1218 = vpack.c.b16 %v1118, %v1114
  %v1219 = vpack.c.b16 %v1119, %v1115
  %v1220 = vpack.c.b16 %v1120, %v1116
  %v1221 = vpack.c.b16 %v1125, %v1121
  %v1222 = vpack.c.b16 %v1126, %v1122
  %v1223 = vpack.c.b16 %v1127, %v1123
  %v1224 = vpack.c.b16 %v1128, %v1124
  %v1225 = vpack.c.b16 %v1133, %v1129
  %v1226 = vpack.c.b16 %v1134, %v1130
  %v1227 = vpack.c.b16 %v1135, %v1131
  %v1228 = vpack.c.b16 %v1136, %v1132
  %v1229 = vpack.c.b16 %v1141, %v1137
  %v1230 = vpack.c.b16 %v1142, %v1138
  %v1231 = vpack.c.b16 %v1143, %v1139
  %v1232 = vpack.c.b16 %v1144, %v1140
  %v1233 = vpack.c.b16 %v1149, %v1145
  %v1234 = vpack.c.b16 %v1150, %v1146
  %v1235 = vpack.c.b16 %v1151, %v1147
  %v1236 = vpack.c.b16 %v1152, %v1148
  %v1237 = vpack.c.b16 %v1157, %v1153
  %v1238 = vpack.c.b16 %v1158, %v1154
  %v1239 = vpack.c.b16 %v1159, %v1155
  %v1240 = vpack.c.b16 %v1160, %v1156
  %v1241 = vpack.c.b16 %v1165, %v1161
  %v1242 = vpack.c.b16 %v1166, %v1162
  %v1243 = vpack.c.b16 %v1167, %v1163
  %v1244 = vpack.c.b16 %v1168, %v1164
  %v1245 = vpack.c.b16 %v1173, %v1169
  %v1246 = vpack.c.b16 %v1174, %v1170
  %v1247 = vpack.c.b16 %v1175, %v1171
  %v1248 = vpack.c.b16 %v1176, %v1172
  %v1249 = vpack.c.b16 %v1181, %v1177
  %v1250 = vpack.c.b16 %v1182, %v1178
  %v1251 = vpack.c.b16 %v1183, %v1179
  %v1252 = vpack.c.b16 %v1184, %v1180
  %v1253 = vpack.c.b16 %v1189, %v1185
  %v1254 = vpack.c.b16 %v1190, %v1186
  %v1255 = vpack.c.b16 %v1191, %v1187
  %v1256 = vpack.c.b16 %v1192, %v1188
  %1321 = vmatprep.subr.bf16.mxu0 %v1194
  %1322 = vmatpush1.bf16.msra.mxu0 %v1193
  %1323 = vmatprep.subr.bf16.mxu0 %v1198
  %1324 = vmatpush1.bf16.msra.mxu0 %v1197
  %1325 = vmatprep.subr.bf16.mxu0 %v1202
  %1326 = vmatpush1.bf16.msra.mxu0 %v1201
  %1327 = vmatprep.subr.bf16.mxu0 %v1206
  %1328 = vmatpush1.bf16.msra.mxu0 %v1205
  %1329 = vmatprep.subr.bf16.mxu0 %v1210
  %1330 = vmatpush1.bf16.msra.mxu0 %v1209
  %1331 = vmatprep.subr.bf16.mxu0 %v1214
  %1332 = vmatpush1.bf16.msra.mxu0 %v1213
  %1333 = vmatprep.subr.bf16.mxu0 %v1218
  %1334 = vmatpush1.bf16.msra.mxu0 %v1217
  %1335 = vmatprep.subr.bf16.mxu0 %v1222
  %1336 = vmatpush1.bf16.msra.mxu0 %v1221
  %1337 = vmatprep.subr.bf16.mxu0 %v1226
  %1338 = vmatpush1.bf16.msra.mxu0 %v1225
  %1339 = vmatprep.subr.bf16.mxu0 %v1230
  %1340 = vmatpush1.bf16.msra.mxu0 %v1229
  %1341 = vmatprep.subr.bf16.mxu0 %v1234
  %1342 = vmatpush1.bf16.msra.mxu0 %v1233
  %1343 = vmatprep.subr.bf16.mxu0 %v1238
  %1344 = vmatpush1.bf16.msra.mxu0 %v1237
  %1345 = vmatprep.subr.bf16.mxu0 %v1242
  %1346 = vmatpush1.bf16.msra.mxu0 %v1241
  %1347 = vmatprep.subr.bf16.mxu0 %v1246
  %1348 = vmatpush1.bf16.msra.mxu0 %v1245
  %1349 = vmatprep.subr.bf16.mxu0 %v1250
  %1350 = vmatpush1.bf16.msra.mxu0 %v1249
  %1351 = vmatprep.subr.bf16.mxu0 %v1254
  %1352 = vmatpush1.bf16.msra.mxu0 %v1253
  %1353 = vmatprep.mubr.bf16.mxu0 %v936
  %1354 = vmatmul.mubr.bf16.gmra.mrb[0].mxu0 %v935
  %v1355 = vpop.f32.mrb[0].mxu0
  %v1356 = vadd.f32 0.0, %v1355
  %v1357 = vpop.f32.mrb[0].mxu0
  %v1358 = vadd.f32 0.0, %v1357
  %v1359 = vpop.f32.mrb[0].mxu0
  %v1360 = vadd.f32 0.0, %v1359
  %v1361 = vpop.f32.mrb[0].mxu0
  %v1362 = vadd.f32 0.0, %v1361
  %1363 = vdwg.mxu0
  %1364 = vmatprep.subr.bf16.mxu0 %v1196
  %1365 = vmatpush1.bf16.msra.mxu0 %v1195
  %1366 = vmatprep.subr.bf16.mxu0 %v1200
  %1367 = vmatpush1.bf16.msra.mxu0 %v1199
  %1368 = vmatprep.subr.bf16.mxu0 %v1204
  %1369 = vmatpush1.bf16.msra.mxu0 %v1203
  %1370 = vmatprep.subr.bf16.mxu0 %v1208
  %1371 = vmatpush1.bf16.msra.mxu0 %v1207
  %1372 = vmatprep.subr.bf16.mxu0 %v1212
  %1373 = vmatpush1.bf16.msra.mxu0 %v1211
  %1374 = vmatprep.subr.bf16.mxu0 %v1216
  %1375 = vmatpush1.bf16.msra.mxu0 %v1215
  %1376 = vmatprep.subr.bf16.mxu0 %v1220
  %1377 = vmatpush1.bf16.msra.mxu0 %v1219
  %1378 = vmatprep.subr.bf16.mxu0 %v1224
  %1379 = vmatpush1.bf16.msra.mxu0 %v1223
  %1380 = vmatprep.subr.bf16.mxu0 %v1228
  %1381 = vmatpush1.bf16.msra.mxu0 %v1227
  %1382 = vmatprep.subr.bf16.mxu0 %v1232
  %1383 = vmatpush1.bf16.msra.mxu0 %v1231
  %1384 = vmatprep.subr.bf16.mxu0 %v1236
  %1385 = vmatpush1.bf16.msra.mxu0 %v1235
  %1386 = vmatprep.subr.bf16.mxu0 %v1240
  %1387 = vmatpush1.bf16.msra.mxu0 %v1239
  %1388 = vmatprep.subr.bf16.mxu0 %v1244
  %1389 = vmatpush1.bf16.msra.mxu0 %v1243
  %1390 = vmatprep.subr.bf16.mxu0 %v1248
  %1391 = vmatpush1.bf16.msra.mxu0 %v1247
  %1392 = vmatprep.subr.bf16.mxu0 %v1252
  %1393 = vmatpush1.bf16.msra.mxu0 %v1251
  %1394 = vmatprep.subr.bf16.mxu0 %v1256
  %1395 = vmatpush1.bf16.msra.mxu0 %v1255
  %1396 = vmatprep.mubr.bf16.mxu0 %v936
  %1397 = vmatmul.mubr.bf16.gmra.mrb[0].mxu0 %v935
  %v1398 = vpop.f32.mrb[0].mxu0
  %v1399 = vadd.f32 0.0, %v1398
  %v1400 = vpop.f32.mrb[0].mxu0
  %v1401 = vadd.f32 0.0, %v1400
  %v1402 = vpop.f32.mrb[0].mxu0
  %v1403 = vadd.f32 0.0, %v1402
  %v1404 = vpop.f32.mrb[0].mxu0
  %v1405 = vadd.f32 0.0, %v1404
  %1406 = vdwg.mxu0
  %1407 = vst [vmem:[%s8] sm:$0xff] %v1356
  %1408 = vst [vmem:[%s8 + $0x8] sm:$0xff] %v1358
  %1409 = vst [vmem:[%s8 + $0x10] sm:$0xff] %v1399
  %1410 = vst [vmem:[%s8 + $0x18] sm:$0xff] %v1401
  %1411 = vst [vmem:[%s8 + $0x20] sm:$0xff] %v1360
  %1412 = vst [vmem:[%s8 + $0x28] sm:$0xff] %v1362
  %1413 = vst [vmem:[%s8 + $0x30] sm:$0xff] %v1403
  %1414 = vst [vmem:[%s8 + $0x38] sm:$0xff] %v1405
  %v1415 = vld [vmem:[%s4] sm:$0xff]
  %v1416 = vld [vmem:[%s4 + $0x8] sm:$0xff]
  %v1417 = vld [vmem:[%s4 + $0x10] sm:$0xff]
  %v1418 = vld [vmem:[%s4 + $0x18] sm:$0xff]
  %v1419 = vld [vmem:[%s4 + $0x20] sm:$0xff]
  %v1420 = vld [vmem:[%s4 + $0x28] sm:$0xff]
  %v1421 = vld [vmem:[%s4 + $0x30] sm:$0xff]
  %v1422 = vld [vmem:[%s4 + $0x38] sm:$0xff]
  %v1423 = vmul.f32 %v1356, %v1415
  %v1424 = vmul.f32 %v1358, %v1416
  %v1425 = vmul.f32 %v1399, %v1417
  %v1426 = vmul.f32 %v1401, %v1418
  %v1427 = vmul.f32 %v1360, %v1419
  %v1428 = vmul.f32 %v1362, %v1420
  %v1429 = vmul.f32 %v1403, %v1421
  %v1430 = vmul.f32 %v1405, %v1422
  %v1431 = vpack.c.bf16 %v1427, %v1423
  %v1432 = vpack.c.bf16 %v1428, %v1424
  %v1433 = vpack.c.bf16 %v1429, %v1425
  %v1434 = vpack.c.bf16 %v1430, %v1426
  %v1435 = vld [vmem:[%s6] sm:$0xff]
  %v1436 = vld [vmem:[%s6 + $0x8] sm:$0xff]
  %v1437 = vld [vmem:[%s6 + $0x10] sm:$0xff]
  %v1438 = vld [vmem:[%s6 + $0x18] sm:$0xff]
  %v1439 = vld [vmem:[%s6 + $0x20] sm:$0xff]
  %v1440 = vld [vmem:[%s6 + $0x28] sm:$0xff]
  %v1441 = vld [vmem:[%s6 + $0x30] sm:$0xff]
  %v1442 = vld [vmem:[%s6 + $0x38] sm:$0xff]
  %v1443 = vld [vmem:[%s6 + $0x40] sm:$0xff]
  %v1444 = vld [vmem:[%s6 + $0x48] sm:$0xff]
  %v1445 = vld [vmem:[%s6 + $0x50] sm:$0xff]
  %v1446 = vld [vmem:[%s6 + $0x58] sm:$0xff]
  %v1447 = vld [vmem:[%s6 + $0x60] sm:$0xff]
  %v1448 = vld [vmem:[%s6 + $0x68] sm:$0xff]
  %v1449 = vld [vmem:[%s6 + $0x70] sm:$0xff]
  %v1450 = vld [vmem:[%s6 + $0x78] sm:$0xff]
  %v1451 = vld [vmem:[%s6 + $0x80] sm:$0xff]
  %v1452 = vld [vmem:[%s6 + $0x88] sm:$0xff]
  %v1453 = vld [vmem:[%s6 + $0x90] sm:$0xff]
  %v1454 = vld [vmem:[%s6 + $0x98] sm:$0xff]
  %v1455 = vld [vmem:[%s6 + $0xa0] sm:$0xff]
  %v1456 = vld [vmem:[%s6 + $0xa8] sm:$0xff]
  %v1457 = vld [vmem:[%s6 + $0xb0] sm:$0xff]
  %v1458 = vld [vmem:[%s6 + $0xb8] sm:$0xff]
  %v1459 = vld [vmem:[%s6 + $0xc0] sm:$0xff]
  %v1460 = vld [vmem:[%s6 + $0xc8] sm:$0xff]
  %v1461 = vld [vmem:[%s6 + $0xd0] sm:$0xff]
  %v1462 = vld [vmem:[%s6 + $0xd8] sm:$0xff]
  %v1463 = vld [vmem:[%s6 + $0xe0] sm:$0xff]
  %v1464 = vld [vmem:[%s6 + $0xe8] sm:$0xff]
  %v1465 = vld [vmem:[%s6 + $0xf0] sm:$0xff]
  %v1466 = vld [vmem:[%s6 + $0xf8] sm:$0xff]
  %v1467 = vld [vmem:[%s6 + $0x100] sm:$0xff]
  %v1468 = vld [vmem:[%s6 + $0x108] sm:$0xff]
  %v1469 = vld [vmem:[%s6 + $0x110] sm:$0xff]
  %v1470 = vld [vmem:[%s6 + $0x118] sm:$0xff]
  %v1471 = vld [vmem:[%s6 + $0x120] sm:$0xff]
  %v1472 = vld [vmem:[%s6 + $0x128] sm:$0xff]
  %v1473 = vld [vmem:[%s6 + $0x130] sm:$0xff]
  %v1474 = vld [vmem:[%s6 + $0x138] sm:$0xff]
  %v1475 = vld [vmem:[%s6 + $0x140] sm:$0xff]
  %v1476 = vld [vmem:[%s6 + $0x148] sm:$0xff]
  %v1477 = vld [vmem:[%s6 + $0x150] sm:$0xff]
  %v1478 = vld [vmem:[%s6 + $0x158] sm:$0xff]
  %v1479 = vld [vmem:[%s6 + $0x160] sm:$0xff]
  %v1480 = vld [vmem:[%s6 + $0x168] sm:$0xff]
  %v1481 = vld [vmem:[%s6 + $0x170] sm:$0xff]
  %v1482 = vld [vmem:[%s6 + $0x178] sm:$0xff]
  %v1483 = vld [vmem:[%s6 + $0x180] sm:$0xff]
  %v1484 = vld [vmem:[%s6 + $0x188] sm:$0xff]
  %v1485 = vld [vmem:[%s6 + $0x190] sm:$0xff]
  %v1486 = vld [vmem:[%s6 + $0x198] sm:$0xff]
  %v1487 = vld [vmem:[%s6 + $0x1a0] sm:$0xff]
  %v1488 = vld [vmem:[%s6 + $0x1a8] sm:$0xff]
  %v1489 = vld [vmem:[%s6 + $0x1b0] sm:$0xff]
  %v1490 = vld [vmem:[%s6 + $0x1b8] sm:$0xff]
  %v1491 = vld [vmem:[%s6 + $0x1c0] sm:$0xff]
  %v1492 = vld [vmem:[%s6 + $0x1c8] sm:$0xff]
  %v1493 = vld [vmem:[%s6 + $0x1d0] sm:$0xff]
  %v1494 = vld [vmem:[%s6 + $0x1d8] sm:$0xff]
  %v1495 = vld [vmem:[%s6 + $0x1e0] sm:$0xff]
  %v1496 = vld [vmem:[%s6 + $0x1e8] sm:$0xff]
  %v1497 = vld [vmem:[%s6 + $0x1f0] sm:$0xff]
  %v1498 = vld [vmem:[%s6 + $0x1f8] sm:$0xff]
  %v1563 = vunpack.c.l.b16 %v1435
  %v1564 = vunpack.c.h.b16 %v1435
  %v1565 = vunpack.c.l.b16 %v1436
  %v1566 = vunpack.c.h.b16 %v1436
  %v1567 = vunpack.c.l.b16 %v1437
  %v1568 = vunpack.c.h.b16 %v1437
  %v1569 = vunpack.c.l.b16 %v1438
  %v1570 = vunpack.c.h.b16 %v1438
  %v1571 = vunpack.c.l.b16 %v1439
  %v1572 = vunpack.c.h.b16 %v1439
  %v1573 = vunpack.c.l.b16 %v1440
  %v1574 = vunpack.c.h.b16 %v1440
  %v1575 = vunpack.c.l.b16 %v1441
  %v1576 = vunpack.c.h.b16 %v1441
  %v1577 = vunpack.c.l.b16 %v1442
  %v1578 = vunpack.c.h.b16 %v1442
  %v1579 = vunpack.c.l.b16 %v1443
  %v1580 = vunpack.c.h.b16 %v1443
  %v1581 = vunpack.c.l.b16 %v1444
  %v1582 = vunpack.c.h.b16 %v1444
  %v1583 = vunpack.c.l.b16 %v1445
  %v1584 = vunpack.c.h.b16 %v1445
  %v1585 = vunpack.c.l.b16 %v1446
  %v1586 = vunpack.c.h.b16 %v1446
  %v1587 = vunpack.c.l.b16 %v1447
  %v1588 = vunpack.c.h.b16 %v1447
  %v1589 = vunpack.c.l.b16 %v1448
  %v1590 = vunpack.c.h.b16 %v1448
  %v1591 = vunpack.c.l.b16 %v1449
  %v1592 = vunpack.c.h.b16 %v1449
  %v1593 = vunpack.c.l.b16 %v1450
  %v1594 = vunpack.c.h.b16 %v1450
  %v1595 = vunpack.c.l.b16 %v1451
  %v1596 = vunpack.c.h.b16 %v1451
  %v1597 = vunpack.c.l.b16 %v1452
  %v1598 = vunpack.c.h.b16 %v1452
  %v1599 = vunpack.c.l.b16 %v1453
  %v1600 = vunpack.c.h.b16 %v1453
  %v1601 = vunpack.c.l.b16 %v1454
  %v1602 = vunpack.c.h.b16 %v1454
  %v1603 = vunpack.c.l.b16 %v1455
  %v1604 = vunpack.c.h.b16 %v1455
  %v1605 = vunpack.c.l.b16 %v1456
  %v1606 = vunpack.c.h.b16 %v1456
  %v1607 = vunpack.c.l.b16 %v1457
  %v1608 = vunpack.c.h.b16 %v1457
  %v1609 = vunpack.c.l.b16 %v1458
  %v1610 = vunpack.c.h.b16 %v1458
  %v1611 = vunpack.c.l.b16 %v1459
  %v1612 = vunpack.c.h.b16 %v1459
  %v1613 = vunpack.c.l.b16 %v1460
  %v1614 = vunpack.c.h.b16 %v1460
  %v1615 = vunpack.c.l.b16 %v1461
  %v1616 = vunpack.c.h.b16 %v1461
  %v1617 = vunpack.c.l.b16 %v1462
  %v1618 = vunpack.c.h.b16 %v1462
  %v1619 = vunpack.c.l.b16 %v1463
  %v1620 = vunpack.c.h.b16 %v1463
  %v1621 = vunpack.c.l.b16 %v1464
  %v1622 = vunpack.c.h.b16 %v1464
  %v1623 = vunpack.c.l.b16 %v1465
  %v1624 = vunpack.c.h.b16 %v1465
  %v1625 = vunpack.c.l.b16 %v1466
  %v1626 = vunpack.c.h.b16 %v1466
  %v1627 = vunpack.c.l.b16 %v1467
  %v1628 = vunpack.c.h.b16 %v1467
  %v1629 = vunpack.c.l.b16 %v1468
  %v1630 = vunpack.c.h.b16 %v1468
  %v1631 = vunpack.c.l.b16 %v1469
  %v1632 = vunpack.c.h.b16 %v1469
  %v1633 = vunpack.c.l.b16 %v1470
  %v1634 = vunpack.c.h.b16 %v1470
  %v1635 = vunpack.c.l.b16 %v1471
  %v1636 = vunpack.c.h.b16 %v1471
  %v1637 = vunpack.c.l.b16 %v1472
  %v1638 = vunpack.c.h.b16 %v1472
  %v1639 = vunpack.c.l.b16 %v1473
  %v1640 = vunpack.c.h.b16 %v1473
  %v1641 = vunpack.c.l.b16 %v1474
  %v1642 = vunpack.c.h.b16 %v1474
  %v1643 = vunpack.c.l.b16 %v1475
  %v1644 = vunpack.c.h.b16 %v1475
  %v1645 = vunpack.c.l.b16 %v1476
  %v1646 = vunpack.c.h.b16 %v1476
  %v1647 = vunpack.c.l.b16 %v1477
  %v1648 = vunpack.c.h.b16 %v1477
  %v1649 = vunpack.c.l.b16 %v1478
  %v1650 = vunpack.c.h.b16 %v1478
  %v1651 = vunpack.c.l.b16 %v1479
  %v1652 = vunpack.c.h.b16 %v1479
  %v1653 = vunpack.c.l.b16 %v1480
  %v1654 = vunpack.c.h.b16 %v1480
  %v1655 = vunpack.c.l.b16 %v1481
  %v1656 = vunpack.c.h.b16 %v1481
  %v1657 = vunpack.c.l.b16 %v1482
  %v1658 = vunpack.c.h.b16 %v1482
  %v1659 = vunpack.c.l.b16 %v1483
  %v1660 = vunpack.c.h.b16 %v1483
  %v1661 = vunpack.c.l.b16 %v1484
  %v1662 = vunpack.c.h.b16 %v1484
  %v1663 = vunpack.c.l.b16 %v1485
  %v1664 = vunpack.c.h.b16 %v1485
  %v1665 = vunpack.c.l.b16 %v1486
  %v1666 = vunpack.c.h.b16 %v1486
  %v1667 = vunpack.c.l.b16 %v1487
  %v1668 = vunpack.c.h.b16 %v1487
  %v1669 = vunpack.c.l.b16 %v1488
  %v1670 = vunpack.c.h.b16 %v1488
  %v1671 = vunpack.c.l.b16 %v1489
  %v1672 = vunpack.c.h.b16 %v1489
  %v1673 = vunpack.c.l.b16 %v1490
  %v1674 = vunpack.c.h.b16 %v1490
  %v1675 = vunpack.c.l.b16 %v1491
  %v1676 = vunpack.c.h.b16 %v1491
  %v1677 = vunpack.c.l.b16 %v1492
  %v1678 = vunpack.c.h.b16 %v1492
  %v1679 = vunpack.c.l.b16 %v1493
  %v1680 = vunpack.c.h.b16 %v1493
  %v1681 = vunpack.c.l.b16 %v1494
  %v1682 = vunpack.c.h.b16 %v1494
  %v1683 = vunpack.c.l.b16 %v1495
  %v1684 = vunpack.c.h.b16 %v1495
  %v1685 = vunpack.c.l.b16 %v1496
  %v1686 = vunpack.c.h.b16 %v1496
  %v1687 = vunpack.c.l.b16 %v1497
  %v1688 = vunpack.c.h.b16 %v1497
  %v1689 = vunpack.c.l.b16 %v1498
  %v1690 = vunpack.c.h.b16 %v1498
  %v1691 = vpack.c.b16 %v1565, %v1563
  %v1692 = vpack.c.b16 %v1566, %v1564
  %v1693 = vpack.c.b16 %v1569, %v1567
  %v1694 = vpack.c.b16 %v1570, %v1568
  %v1695 = vpack.c.b16 %v1573, %v1571
  %v1696 = vpack.c.b16 %v1574, %v1572
  %v1697 = vpack.c.b16 %v1577, %v1575
  %v1698 = vpack.c.b16 %v1578, %v1576
  %v1699 = vpack.c.b16 %v1581, %v1579
  %v1700 = vpack.c.b16 %v1582, %v1580
  %v1701 = vpack.c.b16 %v1585, %v1583
  %v1702 = vpack.c.b16 %v1586, %v1584
  %v1703 = vpack.c.b16 %v1589, %v1587
  %v1704 = vpack.c.b16 %v1590, %v1588
  %v1705 = vpack.c.b16 %v1593, %v1591
  %v1706 = vpack.c.b16 %v1594, %v1592
  %v1707 = vpack.c.b16 %v1597, %v1595
  %v1708 = vpack.c.b16 %v1598, %v1596
  %v1709 = vpack.c.b16 %v1601, %v1599
  %v1710 = vpack.c.b16 %v1602, %v1600
  %v1711 = vpack.c.b16 %v1605, %v1603
  %v1712 = vpack.c.b16 %v1606, %v1604
  %v1713 = vpack.c.b16 %v1609, %v1607
  %v1714 = vpack.c.b16 %v1610, %v1608
  %v1715 = vpack.c.b16 %v1613, %v1611
  %v1716 = vpack.c.b16 %v1614, %v1612
  %v1717 = vpack.c.b16 %v1617, %v1615
  %v1718 = vpack.c.b16 %v1618, %v1616
  %v1719 = vpack.c.b16 %v1621, %v1619
  %v1720 = vpack.c.b16 %v1622, %v1620
  %v1721 = vpack.c.b16 %v1625, %v1623
  %v1722 = vpack.c.b16 %v1626, %v1624
  %v1723 = vpack.c.b16 %v1629, %v1627
  %v1724 = vpack.c.b16 %v1630, %v1628
  %v1725 = vpack.c.b16 %v1633, %v1631
  %v1726 = vpack.c.b16 %v1634, %v1632
  %v1727 = vpack.c.b16 %v1637, %v1635
  %v1728 = vpack.c.b16 %v1638, %v1636
  %v1729 = vpack.c.b16 %v1641, %v1639
  %v1730 = vpack.c.b16 %v1642, %v1640
  %v1731 = vpack.c.b16 %v1645, %v1643
  %v1732 = vpack.c.b16 %v1646, %v1644
  %v1733 = vpack.c.b16 %v1649, %v1647
  %v1734 = vpack.c.b16 %v1650, %v1648
  %v1735 = vpack.c.b16 %v1653, %v1651
  %v1736 = vpack.c.b16 %v1654, %v1652
  %v1737 = vpack.c.b16 %v1657, %v1655
  %v1738 = vpack.c.b16 %v1658, %v1656
  %v1739 = vpack.c.b16 %v1661, %v1659
  %v1740 = vpack.c.b16 %v1662, %v1660
  %v1741 = vpack.c.b16 %v1665, %v1663
  %v1742 = vpack.c.b16 %v1666, %v1664
  %v1743 = vpack.c.b16 %v1669, %v1667
  %v1744 = vpack.c.b16 %v1670, %v1668
  %v1745 = vpack.c.b16 %v1673, %v1671
  %v1746 = vpack.c.b16 %v1674, %v1672
  %v1747 = vpack.c.b16 %v1677, %v1675
  %v1748 = vpack.c.b16 %v1678, %v1676
  %v1749 = vpack.c.b16 %v1681, %v1679
  %v1750 = vpack.c.b16 %v1682, %v1680
  %v1751 = vpack.c.b16 %v1685, %v1683
  %v1752 = vpack.c.b16 %v1686, %v1684
  %v1753 = vpack.c.b16 %v1689, %v1687
  %v1754 = vpack.c.b16 %v1690, %v1688
  %1819 = vmatprep.subr.bf16.mxu0 %v1692
  %1820 = vmatpush1.bf16.msra.mxu0 %v1691
  %1821 = vmatprep.subr.bf16.mxu0 %v1694
  %1822 = vmatpush1.bf16.msra.mxu0 %v1693
  %1823 = vmatprep.subr.bf16.mxu0 %v1696
  %1824 = vmatpush1.bf16.msra.mxu0 %v1695
  %1825 = vmatprep.subr.bf16.mxu0 %v1698
  %1826 = vmatpush1.bf16.msra.mxu0 %v1697
  %1827 = vmatprep.subr.bf16.mxu0 %v1700
  %1828 = vmatpush1.bf16.msra.mxu0 %v1699
  %1829 = vmatprep.subr.bf16.mxu0 %v1702
  %1830 = vmatpush1.bf16.msra.mxu0 %v1701
  %1831 = vmatprep.subr.bf16.mxu0 %v1704
  %1832 = vmatpush1.bf16.msra.mxu0 %v1703
  %1833 = vmatprep.subr.bf16.mxu0 %v1706
  %1834 = vmatpush1.bf16.msra.mxu0 %v1705
  %1835 = vmatprep.subr.bf16.mxu0 %v1708
  %1836 = vmatpush1.bf16.msra.mxu0 %v1707
  %1837 = vmatprep.subr.bf16.mxu0 %v1710
  %1838 = vmatpush1.bf16.msra.mxu0 %v1709
  %1839 = vmatprep.subr.bf16.mxu0 %v1712
  %1840 = vmatpush1.bf16.msra.mxu0 %v1711
  %1841 = vmatprep.subr.bf16.mxu0 %v1714
  %1842 = vmatpush1.bf16.msra.mxu0 %v1713
  %1843 = vmatprep.subr.bf16.mxu0 %v1716
  %1844 = vmatpush1.bf16.msra.mxu0 %v1715
  %1845 = vmatprep.subr.bf16.mxu0 %v1718
  %1846 = vmatpush1.bf16.msra.mxu0 %v1717
  %1847 = vmatprep.subr.bf16.mxu0 %v1720
  %1848 = vmatpush1.bf16.msra.mxu0 %v1719
  %1849 = vmatprep.subr.bf16.mxu0 %v1722
  %1850 = vmatpush1.bf16.msra.mxu0 %v1721
  %1851 = vmatprep.mubr.bf16.mxu0 %v1432
  %1852 = vmatmul.mubr.bf16.gmra.mrb[0].mxu0 %v1431
  %v1853 = vpop.f32.mrb[0].mxu0
  %v1854 = vadd.f32 0.0, %v1853
  %v1855 = vpop.f32.mrb[0].mxu0
  %v1856 = vadd.f32 0.0, %v1855
  %v1857 = vpop.f32.mrb[0].mxu0
  %v1858 = vadd.f32 0.0, %v1857
  %v1859 = vpop.f32.mrb[0].mxu0
  %v1860 = vadd.f32 0.0, %v1859
  %1861 = vdwg.mxu0
  %1862 = vmatprep.subr.bf16.mxu0 %v1724
  %1863 = vmatpush1.bf16.msra.mxu0 %v1723
  %1864 = vmatprep.subr.bf16.mxu0 %v1726
  %1865 = vmatpush1.bf16.msra.mxu0 %v1725
  %1866 = vmatprep.subr.bf16.mxu0 %v1728
  %1867 = vmatpush1.bf16.msra.mxu0 %v1727
  %1868 = vmatprep.subr.bf16.mxu0 %v1730
  %1869 = vmatpush1.bf16.msra.mxu0 %v1729
  %1870 = vmatprep.subr.bf16.mxu0 %v1732
  %1871 = vmatpush1.bf16.msra.mxu0 %v1731
  %1872 = vmatprep.subr.bf16.mxu0 %v1734
  %1873 = vmatpush1.bf16.msra.mxu0 %v1733
  %1874 = vmatprep.subr.bf16.mxu0 %v1736
  %1875 = vmatpush1.bf16.msra.mxu0 %v1735
  %1876 = vmatprep.subr.bf16.mxu0 %v1738
  %1877 = vmatpush1.bf16.msra.mxu0 %v1737
  %1878 = vmatprep.subr.bf16.mxu0 %v1740
  %1879 = vmatpush1.bf16.msra.mxu0 %v1739
  %1880 = vmatprep.subr.bf16.mxu0 %v1742
  %1881 = vmatpush1.bf16.msra.mxu0 %v1741
  %1882 = vmatprep.subr.bf16.mxu0 %v1744
  %1883 = vmatpush1.bf16.msra.mxu0 %v1743
  %1884 = vmatprep.subr.bf16.mxu0 %v1746
  %1885 = vmatpush1.bf16.msra.mxu0 %v1745
  %1886 = vmatprep.subr.bf16.mxu0 %v1748
  %1887 = vmatpush1.bf16.msra.mxu0 %v1747
  %1888 = vmatprep.subr.bf16.mxu0 %v1750
  %1889 = vmatpush1.bf16.msra.mxu0 %v1749
  %1890 = vmatprep.subr.bf16.mxu0 %v1752
  %1891 = vmatpush1.bf16.msra.mxu0 %v1751
  %1892 = vmatprep.subr.bf16.mxu0 %v1754
  %1893 = vmatpush1.bf16.msra.mxu0 %v1753
  %1894 = vmatprep.mubr.bf16.mxu0 %v1434
  %1895 = vmatmul.mubr.bf16.gmra.mrb[0].mxu0 %v1433
  %v1896 = vpop.f32.mrb[0].mxu0
  %v1897 = vadd.f32 %v1854, %v1896
  %v1898 = vpop.f32.mrb[0].mxu0
  %v1899 = vadd.f32 %v1856, %v1898
  %v1900 = vpop.f32.mrb[0].mxu0
  %v1901 = vadd.f32 %v1858, %v1900
  %v1902 = vpop.f32.mrb[0].mxu0
  %v1903 = vadd.f32 %v1860, %v1902
  %1904 = vdwg.mxu0
  %1905 = vst [vmem:[%s9] sm:$0xff] %v1897
  %1906 = vst [vmem:[%s9 + $0x8] sm:$0xff] %v1899
  %1907 = vst [vmem:[%s9 + $0x10] sm:$0xff] %v1901
  %1908 = vst [vmem:[%s9 + $0x18] sm:$0xff] %v1903
  // Predicated region
  $region30: #{fourier_feature_extractor.1} parent=0 // pred_check
    _
  $region31: #{fourier_feature_extractor.1} parent=0 // pred_check_branch
    %1910 = sbr.rel (0) target = $region33
  $region32: #{fourier_feature_extractor.1} parent=0 // pred_region
    _
  $region33: #{fourier_feature_extractor.1} parent=0 // pred_fallthru
    _
  // Predicated region
  $region34: #{fourier_feature_extractor.1} parent=0 // pred_check
    _
  $region35: #{fourier_feature_extractor.1} parent=0 // pred_check_branch
    %1912 = sbr.rel (0) target = $region37
  $region36: #{fourier_feature_extractor.1} parent=0 // pred_region
    _
  $region37: #{fourier_feature_extractor.1} parent=0 // pred_fallthru
    _
  // Predicated region
  $region38: #{fourier_feature_extractor.1} parent=0 // pred_check
    _
  $region39: #{fourier_feature_extractor.1} parent=0 // pred_check_branch
    %1914 = sbr.rel (0) target = $region41
  $region40: #{fourier_feature_extractor.1} parent=0 // pred_region
    _
  $region41: #{fourier_feature_extractor.1} parent=0 // pred_fallthru
    _
  // Predicated region
  $region42: #{fourier_feature_extractor.1} parent=0 // pred_check
    _
  $region43: #{fourier_feature_extractor.1} parent=0 // pred_check_branch
    %1916 = sbr.rel (0) target = $region45
  $region44: #{fourier_feature_extractor.1} parent=0 // pred_region
    _
  $region45: #{fourier_feature_extractor.1} parent=0 // pred_fallthru
    _
  // Predicated region
  $region46: #{fourier_feature_extractor.1} parent=0 // pred_check
    _
  $region47: #{fourier_feature_extractor.1} parent=0 // pred_check_branch
    %1918 = sbr.rel (0) target = $region49
  $region48: #{fourier_feature_extractor.1} parent=0 // pred_region
    _
  $region49: #{fourier_feature_extractor.1} parent=0 // pred_fallthru
    _
  // Predicated region
  $region50: #{fourier_feature_extractor.1} parent=0 // pred_check
    _
  $region51: #{fourier_feature_extractor.1} parent=0 // pred_check_branch
    %1920 = sbr.rel (0) target = $region53
  $region52: #{fourier_feature_extractor.1} parent=0 // pred_region
    _
  $region53: #{fourier_feature_extractor.1} parent=0 // pred_fallthru
    _

// kernel: custom-call.1
$region0: #{custom-call.1}
  %s0 = inlined_call_operand.vmem [shape: f32[2,8,16,16], index: 0, kind: input, shape index: {}]
  %s1 = inlined_call_operand.vmem [shape: f32[2,8,16,16], index: 1, kind: input, shape index: {}]
  %s2 = inlined_call_operand.hbm [shape: c64[2,8,16,16], index: 2, kind: output, shape index: {}]
  %s3 = scalar_lea.hbm %s2, 4096
  $region1: #{custom-call.1} parent=0
    #allocation0 [shape = 's32[1]{0}', space=sflag, size = 0x4, scoped, tag = 'scoped memory for custom-call.1']
    %4 = vsyncpa [#allocation0], 0
    %s5 = sshll.u32 %s0, 4
    %s6 = int_to_ptr.vmem [resolvable:$true] %s5
    %8 = dma.vmem_to_hbm [thread:$0]  %s6, 4096, %s2, [#allocation0]
    %9 = dma.done [#allocation0], 4096
    %10 = vsyncpa [#allocation0], 1
  $region2: #{custom-call.1} parent=0
    #allocation1 [shape = 's32[1]{0}', space=sflag, size = 0x4, scoped, tag = 'scoped memory for custom-call.1']
    %11 = vsyncpa [#allocation1], 0
    %s12 = sshll.u32 %s1, 4
    %s13 = int_to_ptr.vmem [resolvable:$true] %s12
    %15 = dma.vmem_to_hbm [thread:$0]  %s13, 4096, %s3, [#allocation1]
    %16 = dma.done [#allocation1], 4096
    %17 = vsyncpa [#allocation1], 1

</llo_original>
